<compile_context>
chip_gen: v6e
topology: v6e:2x2x1
jax: 0.10.0
libtpu: 0.0.40
codegen_flags: <defaults>
</compile_context>

<pallas_src>
import math
from functools import partial

import jax
import jax.numpy as jnp
from jax.experimental import pallas as pl
from jax.experimental.pallas import tpu as pltpu


def _round_up(x, m):
    return ((x + m - 1) // m) * m


def _device_kind():
    try:
        return jax.devices()[0].device_kind.lower()
    except Exception:
        return ""


def _vmem_capacity_bytes():
    try:
        cap = int(pltpu.get_tpu_info().vmem_capacity_bytes)
        if cap > 0:
            return cap
    except Exception:
        pass
    kind = _device_kind()
    if "v5" in kind or "v6" in kind or "trillium" in kind:
        return 128 * 1024 * 1024
    return 64 * 1024 * 1024          # conservative default (v7x per-TC VMEM)


def _default_tm():
    kind = _device_kind()
    if "v6" in kind or "trillium" in kind:
        return 1024                  # v6e ridge ~650 FLOP/byte with re-streamed weights
    if "v7" in kind:
        return 640                   # 2 TCs share HBM while both re-stream weights
    return 512                       # v5e / v5p / unknown


def _default_gelu_approximate():
    kind = _device_kind()
    # v5e: no bf16 VPU and least VALU slack -> tanh GELU moves to the idle EUP slot.
    return ("v5e" in kind) or ("v5 lite" in kind) or ("v5lite" in kind)


def _gelu(h, approximate):
    if approximate:
        c = math.sqrt(2.0 / math.pi)
        return 0.5 * h * (1.0 + jnp.tanh(c * (h + 0.044715 * (h * h * h))))
    return 0.5 * h * (1.0 + jax.lax.erf(h * (1.0 / math.sqrt(2.0))))


# ---------------------------------------------------------------------------
# Kernels
# ---------------------------------------------------------------------------
def _mlp_fast_kernel(x_ref, w1_ref, b1_ref, w2_ref, b2_ref, o_ref, *,
                     preprocess, approx_gelu):
    """1-D grid over row tiles; W1/W2/b1/b2 are VMEM-resident (invariant blocks)."""
    x = x_ref[...]
    if preprocess:
        x = x * 2 - 1
    h = jnp.dot(x, w1_ref[...], preferred_element_type=jnp.float32) + b1_ref[...]
    h = _gelu(h, approx_gelu)
    y = jnp.dot(h.astype(w2_ref.dtype), w2_ref[...],
                preferred_element_type=jnp.float32)
    o_ref[...] = (y + b2_ref[...]).astype(o_ref.dtype)


def _mlp_htiled_out_acc_kernel(x_ref, w1_ref, b1_ref, w2_ref, b2_ref, o_ref, *,
                               preprocess, approx_gelu):
    """Grid = (M tiles, H tiles).  f32 output block is the accumulator (no scratch)."""
    h_idx = pl.program_id(1)

    @pl.when(h_idx == 0)
    def _():
        # Fold the second bias into the accumulator init (once per M tile).
        o_ref[...] = jnp.broadcast_to(b2_ref[...], o_ref.shape)

    x = x_ref[...]
    if preprocess:
        x = x * 2 - 1
    h = jnp.dot(x, w1_ref[...], preferred_element_type=jnp.float32) + b1_ref[...]
    h = _gelu(h, approx_gelu)
    o_ref[...] += jnp.dot(h.astype(w2_ref.dtype), w2_ref[...],
                          preferred_element_type=jnp.float32)


def _mlp_htiled_scratch_kernel(x_ref, w1_ref, b1_ref, w2_ref, b2_ref, o_ref,
                               acc_ref, *, preprocess, approx_gelu):
    """Grid = (M tiles, H tiles).  f32 scratch accumulator (non-f32 output dtype)."""
    h_idx = pl.program_id(1)
    n_h = pl.num_programs(1)

    @pl.when(h_idx == 0)
    def _():
        acc_ref[...] = jnp.broadcast_to(b2_ref[...], acc_ref.shape)

    x = x_ref[...]
    if preprocess:
        x = x * 2 - 1
    h = jnp.dot(x, w1_ref[...], preferred_element_type=jnp.float32) + b1_ref[...]
    h = _gelu(h, approx_gelu)
    acc_ref[...] += jnp.dot(h.astype(w2_ref.dtype), w2_ref[...],
                            preferred_element_type=jnp.float32)

    @pl.when(h_idx == n_h - 1)
    def _():
        o_ref[...] = acc_ref[...].astype(o_ref.dtype)


# ---------------------------------------------------------------------------
# Wrapper
# ---------------------------------------------------------------------------
def mlp_block(x, w1, b1, w2, b2, *, tm=None, th=None,
              compute_dtype=jnp.bfloat16, gelu_approximate=None,
              apply_preprocess=False, force_h_tiling=False):
    """x: (..., E). w1: (E, H), b1: (H,), w2: (H, E), b2: (E,). Returns (..., E)."""
    orig_shape = x.shape
    out_dtype = x.dtype
    E = orig_shape[-1]
    H = w1.shape[1]
    assert E % 128 == 0, "pad E to a multiple of 128 (lane axis)"
    assert H % 128 == 0, "pad H to a multiple of 128 (lane axis)"

    if gelu_approximate is None:
        gelu_approximate = _default_gelu_approximate()
    if tm is None:
        tm = _default_tm()
    if th is None:
        th = 1024

    x2d = x.reshape(-1, E)
    M = x2d.shape[0]

    in_itemsize = jnp.dtype(compute_dtype).itemsize
    out_itemsize = jnp.dtype(out_dtype).itemsize

    vmem_physical = _vmem_capacity_bytes()
    budget = max(vmem_physical - (16 << 20), 24 << 20)   # leave compiler headroom

    # Row tile: capped by (padded) M; multiple of 128 when >= 128, multiple of 16 else.
    tm_eff = min(tm, _round_up(M, 128))
    tm_eff = max(16, (tm_eff // 16) * 16)
    if tm_eff >= 128:
        tm_eff = (tm_eff // 128) * 128

    # ---- per-path VMEM footprints (2x for double-buffered pipelined operands) ----
    def fast_bytes(t):
        return (2 * t * E * in_itemsize            # x tile
                + 2 * E * H * in_itemsize          # w1 (resident, conservatively 2-buf)
                + 2 * H * E * in_itemsize          # w2
                + 2 * (H + E) * 4                  # biases (f32)
                + 2 * t * E * out_itemsize         # out tile
                + t * H * 4)                       # f32 hidden activation

    use_out_acc = jnp.dtype(out_dtype) == jnp.dtype(jnp.float32)

    def htiled_bytes(t, thh):
        b = (2 * t * E * in_itemsize
             + 2 * E * thh * in_itemsize
             + 2 * thh * E * in_itemsize
             + 2 * (thh + E) * 4
             + 2 * t * E * out_itemsize
             + t * thh * 4)                        # f32 hidden slice
        if not use_out_acc:
            b += t * E * 4                         # separate f32 accumulator
        return b

    # ---- fast path feasibility ----
    tm_fast = tm_eff
    while fast_bytes(tm_fast) > budget and tm_fast > 128:
        tm_fast -= 128
    use_fast = (not force_h_tiling) and fast_bytes(tm_fast) <= budget

    if use_fast:
        tm_eff = tm_fast
        th_eff = H
    else:
        # Hidden tile: largest multiple of 128 dividing H, <= th.
        th_eff = max(128, (min(th, H) // 128) * 128)
        while H % th_eff:
            th_eff -= 128
        while htiled_bytes(tm_eff, th_eff) > budget and tm_eff > 128:
            tm_eff -= 128
        while htiled_bytes(tm_eff, th_eff) > budget and th_eff > 128:
            nxt = th_eff - 128
            while nxt > 128 and H % nxt:
                nxt -= 128
            th_eff = nxt

    M_pad = _round_up(M, tm_eff)
    if M_pad != M:
        x2d = jnp.pad(x2d, ((0, M_pad - M), (0, 0)))

    # bf16 MXU operands (halves x/weight DMA bytes); biases stay f32.
    x2d = x2d.astype(compute_dtype)
    w1c = w1.astype(compute_dtype)
    w2c = w2.astype(compute_dtype)
    b1_2d = b1.reshape(1, H).astype(jnp.float32)
    b2_2d = b2.reshape(1, E).astype(jnp.float32)

    grid_m = M_pad // tm_eff

    footprint = fast_bytes(tm_eff) if use_fast else htiled_bytes(tm_eff, th_eff)
    vmem_limit = int(min(vmem_physical - (8 << 20),
                         max(64 << 20, footprint + (16 << 20))))

    # HBM traffic: weights once total (fast path: invariant blocks are not re-fetched),
    # once per M tile on the H-tiled path.
    weight_passes = 1 if use_fast else grid_m
    cost = pl.CostEstimate(
        flops=4 * M_pad * E * H,                    # two matmuls
        transcendentals=M_pad * H,                  # GELU on the hidden activations
        bytes_accessed=(M_pad * E * in_itemsize
                        + weight_passes * 2 * E * H * in_itemsize
                        + (H + E) * 4
                        + M_pad * E * out_itemsize),
    )

    if use_fast:
        kernel = partial(_mlp_fast_kernel, preprocess=apply_preprocess,
                         approx_gelu=gelu_approximate)
        grid = (grid_m,)
        in_specs = [
            pl.BlockSpec((tm_eff, E), lambda i: (i, 0)),     # x rows
            pl.BlockSpec((E, H), lambda i: (0, 0)),          # w1 (resident)
            pl.BlockSpec((1, H), lambda i: (0, 0)),          # b1
            pl.BlockSpec((H, E), lambda i: (0, 0)),          # w2 (resident)
            pl.BlockSpec((1, E), lambda i: (0, 0)),          # b2
        ]
        out_specs = pl.BlockSpec((tm_eff, E), lambda i: (i, 0))
        scratch_shapes = []
        dims = ("parallel",)
    else:
        grid = (grid_m, H // th_eff)                         # reduction axis last
        in_specs = [
            pl.BlockSpec((tm_eff, E), lambda i, h: (i, 0)),  # x rows
            pl.BlockSpec((E, th_eff), lambda i, h: (0, h)),  # w1 column block
            pl.BlockSpec((1, th_eff), lambda i, h: (0, h)),  # b1 block
            pl.BlockSpec((th_eff, E), lambda i, h: (h, 0)),  # w2 row block
            pl.BlockSpec((1, E), lambda i, h: (0, 0)),       # b2 (invariant)
        ]
        out_specs = pl.BlockSpec((tm_eff, E), lambda i, h: (i, 0))
        dims = ("parallel", "arbitrary")
        if use_out_acc:
            kernel = partial(_mlp_htiled_out_acc_kernel,
                             preprocess=apply_preprocess,
                             approx_gelu=gelu_approximate)
            scratch_shapes = []
        else:
            kernel = partial(_mlp_htiled_scratch_kernel,
                             preprocess=apply_preprocess,
                             approx_gelu=gelu_approximate)
            scratch_shapes = [pltpu.VMEM((tm_eff, E), jnp.float32)]

    out = pl.pallas_call(
        kernel,
        out_shape=jax.ShapeDtypeStruct((M_pad, E), out_dtype),
        grid_spec=pltpu.PrefetchScalarGridSpec(
            num_scalar_prefetch=0,
            grid=grid,
            in_specs=in_specs,
            out_specs=out_specs,
            scratch_shapes=scratch_shapes,
        ),
        compiler_params=pltpu.CompilerParams(
            dimension_semantics=dims,
            vmem_limit_bytes=vmem_limit,
        ),
        cost_estimate=cost,
    )(x2d, w1c, b1_2d, w2c, b2_2d)

    return out[:M].reshape(orig_shape)


def init_mlp_params(key, embedding_dim, mlp_dim, dtype=jnp.float32):
    """nn.Linear-style init (uniform +/- 1/sqrt(fan_in)); weights pre-transposed:
    w1 (E, H), w2 (H, E)."""
    k1, k2, k3, k4 = jax.random.split(key, 4)
    bound1 = 1.0 / math.sqrt(embedding_dim)
    bound2 = 1.0 / math.sqrt(mlp_dim)
    w1 = jax.random.uniform(k1, (embedding_dim, mlp_dim), dtype, -bound1, bound1)
    b1 = jax.random.uniform(k2, (mlp_dim,), dtype, -bound1, bound1)
    w2 = jax.random.uniform(k3, (mlp_dim, embedding_dim), dtype, -bound2, bound2)
    b2 = jax.random.uniform(k4, (embedding_dim,), dtype, -bound2, bound2)
    return w1, b1, w2, b2


if __name__ == "__main__":
    # Small lane-dense shapes: batch=2, seq=100 (exercises M padding), E=128, H=512.
    batch, seq, embedding_dim, mlp_dim = 2, 100, 128, 512

    key = jax.random.PRNGKey(0)
    kx, kp = jax.random.split(key)
    x = jax.random.normal(kx, (batch, seq, embedding_dim), dtype=jnp.float32)
    w1, b1, w2, b2 = init_mlp_params(kp, embedding_dim, mlp_dim)

    approx = _default_gelu_approximate()

    def reference(xin, preprocess):
        # Same bf16-operand / f32-accumulate numerics and same GELU flavor.
        x2 = xin.reshape(-1, embedding_dim).astype(jnp.bfloat16)
        if preprocess:
            x2 = x2 * 2 - 1
        h = jnp.dot(x2, w1.astype(jnp.bfloat16),
                    preferred_element_type=jnp.float32) + b1
        h = _gelu(h, approx)
        y = jnp.dot(h.astype(jnp.bfloat16), w2.astype(jnp.bfloat16),
                    preferred_element_type=jnp.float32) + b2
        return y.astype(xin.dtype).reshape(xin.shape)

    # 1) Auto path (resident-weight fast path at these sizes), no preprocess.
    out_a = jax.block_until_ready(
        mlp_block(x, w1, b1, w2, b2, gelu_approximate=approx))
    ref_a = reference(x, False)
    assert out_a.shape == x.shape
    assert jnp.allclose(out_a, ref_a, atol=2e-2, rtol=2e-2), \
        float(jnp.max(jnp.abs(out_a - ref_a)))

    # Loose bound against full-f32 (torch-equivalent) numerics to validate the
    # bf16-operand tradeoff (review correctness concern).
    xf = x.reshape(-1, embedding_dim)
    hf = jnp.dot(xf, w1, preferred_element_type=jnp.float32) + b1
    hf = _gelu(hf, approx)
    yf = (jnp.dot(hf, w2, preferred_element_type=jnp.float32) + b2).reshape(x.shape)
    assert float(jnp.max(jnp.abs(out_a - yf))) < 5e-2

    # 2) Forced H-tiled reduction, f32 output (accumulates directly into o_ref),
    #    with the fused preprocess (x*2-1).
    out_b = jax.block_until_ready(
        mlp_block(x, w1, b1, w2, b2, tm=128, th=256, force_h_tiling=True,
                  gelu_approximate=approx, apply_preprocess=True))
    ref_b = reference(x, True)
    assert jnp.allclose(out_b, ref_b, atol=2e-2, rtol=2e-2), \
        float(jnp.max(jnp.abs(out_b - ref_b)))

    # 3) Forced H-tiled reduction, bf16 output (exercises the scratch-accumulator path).
    x_bf = x.astype(jnp.bfloat16)
    out_c = jax.block_until_ready(
        mlp_block(x_bf, w1, b1, w2, b2, tm=128, th=256, force_h_tiling=True,
                  gelu_approximate=approx))
    ref_c = reference(x_bf, False)
    assert jnp.allclose(out_c.astype(jnp.float32), ref_c.astype(jnp.float32),
                        atol=3e-2, rtol=3e-2), \
        float(jnp.max(jnp.abs(out_c.astype(jnp.float32) - ref_c.astype(jnp.float32))))

    print("KERNEL_OK")
</pallas_src>

<mosaic_0001>
module attributes {stable_mosaic.version = 11 : i64} {
  func.func @_mlp_fast_kernel(%arg0: i32, %arg1: memref<256x128xbf16, #tpu.memory_space<vmem>>, %arg2: memref<128x512xbf16, #tpu.memory_space<vmem>>, %arg3: memref<1x512xf32, #tpu.memory_space<vmem>>, %arg4: memref<512x128xbf16, #tpu.memory_space<vmem>>, %arg5: memref<1x128xf32, #tpu.memory_space<vmem>>, %arg6: memref<256x128xf32, #tpu.memory_space<vmem>>) attributes {dimension_semantics = [#tpu.dimension_semantics<parallel>], iteration_bounds = array<i64: 1>, scalar_prefetch = 0 : i64, scratch_operands = 0 : i64, tpu.core_type = #tpu.core_type<tc>, window_params = [{transform_indices = @transform_0, window_bounds = array<i64: 256, 128>}, {pipeline_mode = #tpu.pipeline_mode<synchronous>, transform_indices = @transform_1, window_bounds = array<i64: 128, 512>}, {pipeline_mode = #tpu.pipeline_mode<synchronous>, transform_indices = @transform_2, window_bounds = array<i64: 1, 512>}, {pipeline_mode = #tpu.pipeline_mode<synchronous>, transform_indices = @transform_3, window_bounds = array<i64: 512, 128>}, {pipeline_mode = #tpu.pipeline_mode<synchronous>, transform_indices = @transform_4, window_bounds = array<i64: 1, 128>}, {transform_indices = @transform_5, window_bounds = array<i64: 256, 128>}]} {
    %c0 = arith.constant 0 : index
    %c0_0 = arith.constant 0 : index
    %0 = vector.load %arg1[%c0, %c0_0] : memref<256x128xbf16, #tpu.memory_space<vmem>>, vector<256x128xbf16>
    %c0_1 = arith.constant 0 : index
    %c0_2 = arith.constant 0 : index
    %1 = vector.load %arg2[%c0_1, %c0_2] : memref<128x512xbf16, #tpu.memory_space<vmem>>, vector<128x512xbf16>
    %cst = arith.constant dense<0.000000e+00> : vector<256x512xf32>
    %2 = tpu.matmul %0, %1, %cst {dimension_numbers = #tpu.dot_dimension_numbers<[1], [0], [0], [1], [0, 0, 1, 1], [], []>} : vector<256x128xbf16>, vector<128x512xbf16>, vector<256x512xf32> -> vector<256x512xf32>
    %c0_3 = arith.constant 0 : index
    %c0_4 = arith.constant 0 : index
    %3 = vector.load %arg3[%c0_3, %c0_4] : memref<1x512xf32, #tpu.memory_space<vmem>>, vector<1x512xf32>
    %4 = vector.broadcast %3 : vector<1x512xf32> to vector<256x512xf32>
    %5 = arith.addf %2, %4 : vector<256x512xf32>
    %cst_5 = arith.constant 5.000000e-01 : f32
    %6 = vector.broadcast %cst_5 : f32 to vector<256x512xf32>
    %7 = arith.mulf %6, %5 : vector<256x512xf32>
    %cst_6 = arith.constant 0.707106769 : f32
    %8 = vector.broadcast %cst_6 : f32 to vector<256x512xf32>
    %9 = arith.mulf %5, %8 : vector<256x512xf32>
    %10 = math.erf %9 : vector<256x512xf32>
    %cst_7 = arith.constant 1.000000e+00 : f32
    %11 = vector.broadcast %cst_7 : f32 to vector<256x512xf32>
    %12 = arith.addf %11, %10 : vector<256x512xf32>
    %13 = arith.mulf %7, %12 : vector<256x512xf32>
    %14 = arith.truncf %13 : vector<256x512xf32> to vector<256x512xbf16>
    %c0_8 = arith.constant 0 : index
    %c0_9 = arith.constant 0 : index
    %15 = vector.load %arg4[%c0_8, %c0_9] : memref<512x128xbf16, #tpu.memory_space<vmem>>, vector<512x128xbf16>
    %cst_10 = arith.constant dense<0.000000e+00> : vector<256x128xf32>
    %16 = tpu.matmul %14, %15, %cst_10 {dimension_numbers = #tpu.dot_dimension_numbers<[1], [0], [0], [1], [0, 0, 1, 1], [], []>} : vector<256x512xbf16>, vector<512x128xbf16>, vector<256x128xf32> -> vector<256x128xf32>
    %c0_11 = arith.constant 0 : index
    %c0_12 = arith.constant 0 : index
    %17 = vector.load %arg5[%c0_11, %c0_12] : memref<1x128xf32, #tpu.memory_space<vmem>>, vector<1x128xf32>
    %18 = vector.broadcast %17 : vector<1x128xf32> to vector<256x128xf32>
    %19 = arith.addf %16, %18 : vector<256x128xf32>
    %c0_13 = arith.constant 0 : index
    %c0_14 = arith.constant 0 : index
    %20 = vector.load %arg6[%c0_13, %c0_14] : memref<256x128xf32, #tpu.memory_space<vmem>>, vector<256x128xf32>
    tpu.vector_store %arg6[%c0_13, %c0_14], %19 {strides = array<i32>} : memref<256x128xf32, #tpu.memory_space<vmem>>, vector<256x128xf32>,
    return
  }
  func.func @transform_0(%arg0: i32) -> (i32, i32) {
    %c0_i32 = arith.constant 0 : i32
    %c0_i32_0 = arith.constant 0 : i32
    return %arg0, %c0_i32 : i32, i32
  }
  func.func @transform_1(%arg0: i32) -> (i32, i32) {
    %c0_i32 = arith.constant 0 : i32
    %c0_i32_0 = arith.constant 0 : i32
    %c0_i32_1 = arith.constant 0 : i32
    return %c0_i32, %c0_i32_0 : i32, i32
  }
  func.func @transform_2(%arg0: i32) -> (i32, i32) {
    %c0_i32 = arith.constant 0 : i32
    %c0_i32_0 = arith.constant 0 : i32
    %c0_i32_1 = arith.constant 0 : i32
    return %c0_i32, %c0_i32_0 : i32, i32
  }
  func.func @transform_3(%arg0: i32) -> (i32, i32) {
    %c0_i32 = arith.constant 0 : i32
    %c0_i32_0 = arith.constant 0 : i32
    %c0_i32_1 = arith.constant 0 : i32
    return %c0_i32, %c0_i32_0 : i32, i32
  }
  func.func @transform_4(%arg0: i32) -> (i32, i32) {
    %c0_i32 = arith.constant 0 : i32
    %c0_i32_0 = arith.constant 0 : i32
    %c0_i32_1 = arith.constant 0 : i32
    return %c0_i32, %c0_i32_0 : i32, i32
  }
  func.func @transform_5(%arg0: i32) -> (i32, i32) {
    %c0_i32 = arith.constant 0 : i32
    %c0_i32_0 = arith.constant 0 : i32
    return %arg0, %c0_i32 : i32, i32
  }
}

</mosaic_0001>

<llo_original>
// kernel: tpu_custom_call.1
$region0: #{tpu_custom_call.1}
  #allocation0 [shape = 'u32[]', space=smem, size = 0x4, offset = 0x4, fixed_abs, tag = 'smem constant byte address 0x4 - core index']
  #allocation1 [shape = 'u32[144,128]{1,0:T(1,128)}', space=vmem, size = 0x12000, scoped, tag = 'internal scratch']
  %s0 = inlined_call_operand.hbm [shape: bf16[256,128], index: 0, kind: input, shape index: {}]
  %s1 = inlined_call_operand.hbm [shape: bf16[128,512], index: 1, kind: input, shape index: {}]
  %s2 = inlined_call_operand.hbm [shape: f32[1,512], index: 2, kind: input, shape index: {}]
  %s3 = inlined_call_operand.hbm [shape: bf16[512,128], index: 3, kind: input, shape index: {}]
  %s4 = inlined_call_operand.vmem [shape: f32[1,128], index: 4, kind: input, shape index: {}]
  %s5 = inlined_call_operand.hbm [shape: f32[256,128], index: 5, kind: output, shape index: {}]
  %s6 = sld [smem:[#allocation0]]
  $region46: #{tpu_custom_call.1} parent=0
    _
  %s8 = ssub.s32 1, %s6
  %s9 = scalar_select 0, %s8, %s6
  $region1: #{tpu_custom_call.1} parent=0
    #allocation2 [shape = 'u8[65536]{0}', space=vmem, size = 0x10000, scoped, tag = 'input window, operand 0, single buffered']
    #allocation3 [shape = 's32[1]{0}', space=sflag, size = 0x4, scoped, tag = 'scoped memory for tpu_custom_call.1']
    #allocation4 [shape = 's32[1]{0}', space=sflag, size = 0x4, scoped, tag = 'scoped memory for tpu_custom_call.1']
    #allocation5 [shape = 'u8[131072]{0}', space=vmem, size = 0x20000, scoped, tag = 'input window, operand 1, single buffered']
    #allocation6 [shape = 's32[1]{0}', space=sflag, size = 0x4, scoped, tag = 'scoped memory for tpu_custom_call.1']
    #allocation7 [shape = 'u8[2048]{0}', space=vmem, size = 0x800, scoped, tag = 'input window, operand 2, single buffered']
    #allocation8 [shape = 'u8[131072]{0}', space=vmem, size = 0x20000, scoped, tag = 'input window, operand 3, single buffered']
    #allocation9 [shape = 's32[1]{0}', space=sflag, size = 0x4, scoped, tag = 'scoped memory for tpu_custom_call.1']
    #allocation10 [shape = 'u8[131072]{0}', space=vmem, size = 0x20000, scoped, tag = 'output window, operand 0, single buffered']
    %10 = vsyncpa [#allocation3], 0
    %11 = vsyncpa [#allocation6], 0
    %12 = vsyncpa [#allocation9], 0
    %13 = vsyncpa [#allocation4], 0
    // Predicated region
    $region2: #{tpu_custom_call.1} parent=1 // pred_check
      _
    $region3: #{tpu_custom_call.1} parent=1 // pred_check_branch
      %15 = sbr.rel (0) target = $region5
    $region4: #{tpu_custom_call.1} parent=1 // pred_region
      %s17 = ssub.s32 2048, 2048
      %18 = vsyncadd [#allocation3], %s17
      %s19 = sshll.u32 [#allocation2], 4
      %s20 = int_to_ptr.vmem [resolvable:$true] %s19
      %25 = dma.hbm_to_vmem [thread:$0]  %s0, 2048, %s20, [#allocation3], 64, 64, 4
    $region5: #{tpu_custom_call.1} parent=1 // pred_fallthru
      _
    // Predicated region
    $region6: #{tpu_custom_call.1} parent=1 // pred_check
      _
    $region7: #{tpu_custom_call.1} parent=1 // pred_check_branch
      %27 = sbr.rel (0) target = $region9
    $region8: #{tpu_custom_call.1} parent=1 // pred_region
      %s29 = ssub.s32 4096, 4096
      %30 = vsyncadd [#allocation6], %s29
      %s31 = sshll.u32 [#allocation5], 4
      %s32 = int_to_ptr.vmem [resolvable:$true] %s31
      %37 = dma.hbm_to_vmem [thread:$0]  %s1, 4096, %s32, [#allocation6], 256, 256, 16
    $region9: #{tpu_custom_call.1} parent=1 // pred_fallthru
      _
    // Predicated region
    $region10: #{tpu_custom_call.1} parent=1 // pred_check
      _
    $region11: #{tpu_custom_call.1} parent=1 // pred_check_branch
      %39 = sbr.rel (0) target = $region13
    $region12: #{tpu_custom_call.1} parent=1 // pred_region
      %s41 = ssub.s32 64, 64
      %42 = vsyncadd [#allocation6], %s41
      %s44 = sshll.u32 [#allocation7], 4
      %s45 = int_to_ptr.vmem [resolvable:$true] %s44
      %47 = dma.hbm_to_vmem [thread:$0]  %s2, 64, %s45, [#allocation6]
    $region13: #{tpu_custom_call.1} parent=1 // pred_fallthru
      _
    // Predicated region
    $region14: #{tpu_custom_call.1} parent=1 // pred_check
      _
    $region15: #{tpu_custom_call.1} parent=1 // pred_check_branch
      %49 = sbr.rel (0) target = $region17
    $region16: #{tpu_custom_call.1} parent=1 // pred_region
      %s51 = ssub.s32 4096, 4096
      %52 = vsyncadd [#allocation9], %s51
      %s53 = sshll.u32 [#allocation8], 4
      %s54 = int_to_ptr.vmem [resolvable:$true] %s53
      %59 = dma.hbm_to_vmem [thread:$0]  %s3, 4096, %s54, [#allocation9], 64, 64, 4
    $region17: #{tpu_custom_call.1} parent=1 // pred_fallthru
      _
    // Predicated region
    $region18: #{tpu_custom_call.1} parent=1 // pred_check
      _
    $region19: #{tpu_custom_call.1} parent=1 // pred_check_branch
      %61 = sbr.rel (0) target = $region21
    $region20: #{tpu_custom_call.1} parent=1 // pred_region
      _
    $region21: #{tpu_custom_call.1} parent=1 // pred_fallthru
      _
    // Predicated region
    $region22: #{tpu_custom_call.1} parent=1 // pred_check
      _
    $region23: #{tpu_custom_call.1} parent=1 // pred_check_branch
      %63 = sbr.rel (0) target = $region25
    $region24: #{tpu_custom_call.1} parent=1 // pred_region
      %64 = dma.done [#allocation3], 2048
    $region25: #{tpu_custom_call.1} parent=1 // pred_fallthru
      _
    // Predicated region
    $region26: #{tpu_custom_call.1} parent=1 // pred_check
      _
    $region27: #{tpu_custom_call.1} parent=1 // pred_check_branch
      %66 = sbr.rel (0) target = $region29
    $region28: #{tpu_custom_call.1} parent=1 // pred_region
      %67 = dma.done [#allocation6], 4096
    $region29: #{tpu_custom_call.1} parent=1 // pred_fallthru
      _
    // Predicated region
    $region30: #{tpu_custom_call.1} parent=1 // pred_check
      _
    $region31: #{tpu_custom_call.1} parent=1 // pred_check_branch
      %69 = sbr.rel (0) target = $region33
    $region32: #{tpu_custom_call.1} parent=1 // pred_region
      %70 = dma.done [#allocation6], 64
    $region33: #{tpu_custom_call.1} parent=1 // pred_fallthru
      _
    // Predicated region
    $region34: #{tpu_custom_call.1} parent=1 // pred_check
      _
    $region35: #{tpu_custom_call.1} parent=1 // pred_check_branch
      %72 = sbr.rel (0) target = $region37
    $region36: #{tpu_custom_call.1} parent=1 // pred_region
      %73 = dma.done [#allocation9], 4096
    $region37: #{tpu_custom_call.1} parent=1 // pred_fallthru
      _
    %v75 = vld [vmem:[#allocation2] sm:$0xf]
    %v76 = vld [vmem:[#allocation2 + $0x4] sm:$0xf]
    %v77 = vld [vmem:[#allocation2 + $0x8] sm:$0xf]
    %v78 = vld [vmem:[#allocation2 + $0xc] sm:$0xf]
    %v79 = vld [vmem:[#allocation2 + $0x10] sm:$0xf]
    %v80 = vld [vmem:[#allocation2 + $0x14] sm:$0xf]
    %v81 = vld [vmem:[#allocation2 + $0x18] sm:$0xf]
    %v82 = vld [vmem:[#allocation2 + $0x1c] sm:$0xf]
    %v83 = vld [vmem:[#allocation2 + $0x20] sm:$0xf]
    %v84 = vld [vmem:[#allocation2 + $0x24] sm:$0xf]
    %v85 = vld [vmem:[#allocation2 + $0x28] sm:$0xf]
    %v86 = vld [vmem:[#allocation2 + $0x2c] sm:$0xf]
    %v87 = vld [vmem:[#allocation2 + $0x30] sm:$0xf]
    %v88 = vld [vmem:[#allocation2 + $0x34] sm:$0xf]
    %v89 = vld [vmem:[#allocation2 + $0x38] sm:$0xf]
    %v90 = vld [vmem:[#allocation2 + $0x3c] sm:$0xf]
    %v91 = vld [vmem:[#allocation2 + $0x40] sm:$0xf]
    %v92 = vld [vmem:[#allocation2 + $0x44] sm:$0xf]
    %v93 = vld [vmem:[#allocation2 + $0x48] sm:$0xf]
    %v94 = vld [vmem:[#allocation2 + $0x4c] sm:$0xf]
    %v95 = vld [vmem:[#allocation2 + $0x50] sm:$0xf]
    %v96 = vld [vmem:[#allocation2 + $0x54] sm:$0xf]
    %v97 = vld [vmem:[#allocation2 + $0x58] sm:$0xf]
    %v98 = vld [vmem:[#allocation2 + $0x5c] sm:$0xf]
    %v99 = vld [vmem:[#allocation2 + $0x60] sm:$0xf]
    %v100 = vld [vmem:[#allocation2 + $0x64] sm:$0xf]
    %v101 = vld [vmem:[#allocation2 + $0x68] sm:$0xf]
    %v102 = vld [vmem:[#allocation2 + $0x6c] sm:$0xf]
    %v103 = vld [vmem:[#allocation2 + $0x70] sm:$0xf]
    %v104 = vld [vmem:[#allocation2 + $0x74] sm:$0xf]
    %v105 = vld [vmem:[#allocation2 + $0x78] sm:$0xf]
    %v106 = vld [vmem:[#allocation2 + $0x7c] sm:$0xf]
    %v107 = vld [vmem:[#allocation5] sm:$0xff]
    %v108 = vld [vmem:[#allocation5 + $0x8] sm:$0xff]
    %v109 = vld [vmem:[#allocation5 + $0x10] sm:$0xff]
    %v110 = vld [vmem:[#allocation5 + $0x18] sm:$0xff]
    %v111 = vld [vmem:[#allocation5 + $0x20] sm:$0xff]
    %v112 = vld [vmem:[#allocation5 + $0x28] sm:$0xff]
    %v113 = vld [vmem:[#allocation5 + $0x30] sm:$0xff]
    %v114 = vld [vmem:[#allocation5 + $0x38] sm:$0xff]
    %v115 = vld [vmem:[#allocation5 + $0x40] sm:$0xff]
    %v116 = vld [vmem:[#allocation5 + $0x48] sm:$0xff]
    %v117 = vld [vmem:[#allocation5 + $0x50] sm:$0xff]
    %v118 = vld [vmem:[#allocation5 + $0x58] sm:$0xff]
    %v119 = vld [vmem:[#allocation5 + $0x60] sm:$0xff]
    %v120 = vld [vmem:[#allocation5 + $0x68] sm:$0xff]
    %v121 = vld [vmem:[#allocation5 + $0x70] sm:$0xff]
    %v122 = vld [vmem:[#allocation5 + $0x78] sm:$0xff]
    %v123 = vld [vmem:[#allocation5 + $0x80] sm:$0xff]
    %v124 = vld [vmem:[#allocation5 + $0x88] sm:$0xff]
    %v125 = vld [vmem:[#allocation5 + $0x90] sm:$0xff]
    %v126 = vld [vmem:[#allocation5 + $0x98] sm:$0xff]
    %v127 = vld [vmem:[#allocation5 + $0xa0] sm:$0xff]
    %v128 = vld [vmem:[#allocation5 + $0xa8] sm:$0xff]
    %v129 = vld [vmem:[#allocation5 + $0xb0] sm:$0xff]
    %v130 = vld [vmem:[#allocation5 + $0xb8] sm:$0xff]
    %v131 = vld [vmem:[#allocation5 + $0xc0] sm:$0xff]
    %v132 = vld [vmem:[#allocation5 + $0xc8] sm:$0xff]
    %v133 = vld [vmem:[#allocation5 + $0xd0] sm:$0xff]
    %v134 = vld [vmem:[#allocation5 + $0xd8] sm:$0xff]
    %v135 = vld [vmem:[#allocation5 + $0xe0] sm:$0xff]
    %v136 = vld [vmem:[#allocation5 + $0xe8] sm:$0xff]
    %v137 = vld [vmem:[#allocation5 + $0xf0] sm:$0xff]
    %v138 = vld [vmem:[#allocation5 + $0xf8] sm:$0xff]
    %v139 = vld [vmem:[#allocation7] sm:$0xf]
    %v141 = vlaneseq
    %v142 = vshrl.u32 %v141, 7
    %v143 = vsub.s32 0, %v142
    %v144 = vrot.slane %v139, %v143
    %v145 = vlaneseq
    %v146 = vshrl.u32 %v145, 7
    %v147 = vsub.s32 1, %v146
    %v148 = vrot.slane %v139, %v147
    %v149 = vlaneseq
    %v150 = vshrl.u32 %v149, 7
    %v151 = vsub.s32 2, %v150
    %v152 = vrot.slane %v139, %v151
    %v153 = vlaneseq
    %v154 = vshrl.u32 %v153, 7
    %v155 = vsub.s32 3, %v154
    %v156 = vrot.slane %v139, %v155
    %v193 = vunpack.c.l.b16 %v75
    %v194 = vunpack.c.l.b16 %v76
    %v195 = vunpack.c.l.b16 %v77
    %v196 = vunpack.c.l.b16 %v78
    %v197 = vunpack.c.l.b16 %v79
    %v198 = vunpack.c.l.b16 %v80
    %v199 = vunpack.c.l.b16 %v81
    %v200 = vunpack.c.l.b16 %v82
    %v201 = vunpack.c.l.b16 %v83
    %v202 = vunpack.c.l.b16 %v84
    %v203 = vunpack.c.l.b16 %v85
    %v204 = vunpack.c.l.b16 %v86
    %v205 = vunpack.c.l.b16 %v87
    %v206 = vunpack.c.l.b16 %v88
    %v207 = vunpack.c.l.b16 %v89
    %v208 = vunpack.c.l.b16 %v90
    %v209 = vunpack.c.l.b16 %v91
    %v210 = vunpack.c.l.b16 %v92
    %v211 = vunpack.c.l.b16 %v93
    %v212 = vunpack.c.l.b16 %v94
    %v213 = vunpack.c.l.b16 %v95
    %v214 = vunpack.c.l.b16 %v96
    %v215 = vunpack.c.l.b16 %v97
    %v216 = vunpack.c.l.b16 %v98
    %v217 = vunpack.c.l.b16 %v99
    %v218 = vunpack.c.l.b16 %v100
    %v219 = vunpack.c.l.b16 %v101
    %v220 = vunpack.c.l.b16 %v102
    %v221 = vunpack.c.l.b16 %v103
    %v222 = vunpack.c.l.b16 %v104
    %v223 = vunpack.c.l.b16 %v105
    %v224 = vunpack.c.l.b16 %v106
    %v225 = vpack.c.b16 %v194, %v193
    %v226 = vpack.c.b16 %v196, %v195
    %v227 = vpack.c.b16 %v198, %v197
    %v228 = vpack.c.b16 %v200, %v199
    %v229 = vpack.c.b16 %v202, %v201
    %v230 = vpack.c.b16 %v204, %v203
    %v231 = vpack.c.b16 %v206, %v205
    %v232 = vpack.c.b16 %v208, %v207
    %v233 = vpack.c.b16 %v210, %v209
    %v234 = vpack.c.b16 %v212, %v211
    %v235 = vpack.c.b16 %v214, %v213
    %v236 = vpack.c.b16 %v216, %v215
    %v237 = vpack.c.b16 %v218, %v217
    %v238 = vpack.c.b16 %v220, %v219
    %v239 = vpack.c.b16 %v222, %v221
    %v240 = vpack.c.b16 %v224, %v223
    %v289 = vunpack.c.l.b16 %v107
    %v290 = vunpack.c.h.b16 %v107
    %v291 = vunpack.c.l.b16 %v108
    %v292 = vunpack.c.h.b16 %v108
    %v293 = vunpack.c.l.b16 %v109
    %v294 = vunpack.c.h.b16 %v109
    %v295 = vunpack.c.l.b16 %v110
    %v296 = vunpack.c.h.b16 %v110
    %v297 = vunpack.c.l.b16 %v111
    %v298 = vunpack.c.h.b16 %v111
    %v299 = vunpack.c.l.b16 %v112
    %v300 = vunpack.c.h.b16 %v112
    %v301 = vunpack.c.l.b16 %v113
    %v302 = vunpack.c.h.b16 %v113
    %v303 = vunpack.c.l.b16 %v114
    %v304 = vunpack.c.h.b16 %v114
    %v305 = vunpack.c.l.b16 %v115
    %v306 = vunpack.c.h.b16 %v115
    %v307 = vunpack.c.l.b16 %v116
    %v308 = vunpack.c.h.b16 %v116
    %v309 = vunpack.c.l.b16 %v117
    %v310 = vunpack.c.h.b16 %v117
    %v311 = vunpack.c.l.b16 %v118
    %v312 = vunpack.c.h.b16 %v118
    %v313 = vunpack.c.l.b16 %v119
    %v314 = vunpack.c.h.b16 %v119
    %v315 = vunpack.c.l.b16 %v120
    %v316 = vunpack.c.h.b16 %v120
    %v317 = vunpack.c.l.b16 %v121
    %v318 = vunpack.c.h.b16 %v121
    %v319 = vunpack.c.l.b16 %v122
    %v320 = vunpack.c.h.b16 %v122
    %v321 = vunpack.c.l.b16 %v123
    %v322 = vunpack.c.h.b16 %v123
    %v323 = vunpack.c.l.b16 %v124
    %v324 = vunpack.c.h.b16 %v124
    %v325 = vunpack.c.l.b16 %v125
    %v326 = vunpack.c.h.b16 %v125
    %v327 = vunpack.c.l.b16 %v126
    %v328 = vunpack.c.h.b16 %v126
    %v329 = vunpack.c.l.b16 %v127
    %v330 = vunpack.c.h.b16 %v127
    %v331 = vunpack.c.l.b16 %v128
    %v332 = vunpack.c.h.b16 %v128
    %v333 = vunpack.c.l.b16 %v129
    %v334 = vunpack.c.h.b16 %v129
    %v335 = vunpack.c.l.b16 %v130
    %v336 = vunpack.c.h.b16 %v130
    %v337 = vunpack.c.l.b16 %v131
    %v338 = vunpack.c.h.b16 %v131
    %v339 = vunpack.c.l.b16 %v132
    %v340 = vunpack.c.h.b16 %v132
    %v341 = vunpack.c.l.b16 %v133
    %v342 = vunpack.c.h.b16 %v133
    %v343 = vunpack.c.l.b16 %v134
    %v344 = vunpack.c.h.b16 %v134
    %v345 = vunpack.c.l.b16 %v135
    %v346 = vunpack.c.h.b16 %v135
    %v347 = vunpack.c.l.b16 %v136
    %v348 = vunpack.c.h.b16 %v136
    %v349 = vunpack.c.l.b16 %v137
    %v350 = vunpack.c.h.b16 %v137
    %v351 = vunpack.c.l.b16 %v138
    %v352 = vunpack.c.h.b16 %v138
    %v353 = vpack.c.b16 %v293, %v289
    %v354 = vpack.c.b16 %v294, %v290
    %v355 = vpack.c.b16 %v295, %v291
    %v356 = vpack.c.b16 %v296, %v292
    %v357 = vpack.c.b16 %v301, %v297
    %v358 = vpack.c.b16 %v302, %v298
    %v359 = vpack.c.b16 %v303, %v299
    %v360 = vpack.c.b16 %v304, %v300
    %v361 = vpack.c.b16 %v309, %v305
    %v362 = vpack.c.b16 %v310, %v306
    %v363 = vpack.c.b16 %v311, %v307
    %v364 = vpack.c.b16 %v312, %v308
    %v365 = vpack.c.b16 %v317, %v313
    %v366 = vpack.c.b16 %v318, %v314
    %v367 = vpack.c.b16 %v319, %v315
    %v368 = vpack.c.b16 %v320, %v316
    %v369 = vpack.c.b16 %v325, %v321
    %v370 = vpack.c.b16 %v326, %v322
    %v371 = vpack.c.b16 %v327, %v323
    %v372 = vpack.c.b16 %v328, %v324
    %v373 = vpack.c.b16 %v333, %v329
    %v374 = vpack.c.b16 %v334, %v330
    %v375 = vpack.c.b16 %v335, %v331
    %v376 = vpack.c.b16 %v336, %v332
    %v377 = vpack.c.b16 %v341, %v337
    %v378 = vpack.c.b16 %v342, %v338
    %v379 = vpack.c.b16 %v343, %v339
    %v380 = vpack.c.b16 %v344, %v340
    %v381 = vpack.c.b16 %v349, %v345
    %v382 = vpack.c.b16 %v350, %v346
    %v383 = vpack.c.b16 %v351, %v347
    %v384 = vpack.c.b16 %v352, %v348
    %417 = vmatprep.subr.bf16.mxu0 %v382
    %418 = vmatpush1.bf16.msra.mxu0 %v381
    %419 = vmatprep.subr.bf16.mxu0 %v378
    %420 = vmatpush1.bf16.msra.mxu0 %v377
    %421 = vmatprep.subr.bf16.mxu0 %v374
    %422 = vmatpush1.bf16.msra.mxu0 %v373
    %423 = vmatprep.subr.bf16.mxu0 %v370
    %424 = vmatpush1.bf16.msra.mxu0 %v369
    %425 = vmatprep.subr.bf16.mxu0 %v366
    %426 = vmatpush1.bf16.msra.mxu0 %v365
    %427 = vmatprep.subr.bf16.mxu0 %v362
    %428 = vmatpush1.bf16.msra.mxu0 %v361
    %429 = vmatprep.subr.bf16.mxu0 %v358
    %430 = vmatpush1.bf16.msra.mxu0 %v357
    %431 = vmatprep.subr.bf16.mxu0 %v354
    %432 = vmatpush1.bf16.msra.mxu0 %v353
    %433 = vmatprep.subr.bf16.mxu0 0
    %434 = vmatpush2.bf16.msra.mxu0 0
    %435 = vmatprep.subr.bf16.mxu0 0
    %436 = vmatpush2.bf16.msra.mxu0 0
    %437 = vmatprep.subr.bf16.mxu0 0
    %438 = vmatpush2.bf16.msra.mxu0 0
    %439 = vmatprep.subr.bf16.mxu0 0
    %440 = vmatpush2.bf16.msra.mxu0 0
    %441 = vmatprep.subr.bf16.mxu0 0
    %442 = vmatpush2.bf16.msra.mxu0 0
    %443 = vmatprep.subr.bf16.mxu0 0
    %444 = vmatpush2.bf16.msra.mxu0 0
    %445 = vmatprep.subr.bf16.mxu0 0
    %446 = vmatpush2.bf16.msra.mxu0 0
    %447 = vmatprep.subr.bf16.mxu0 0
    %448 = vmatpush2.bf16.msra.mxu0 0
    %449 = vmatprep.mubr.bf16.mxu0 0
    %450 = vmatmul.mubr.bf16.gmra.mxu0 %v225
    %v451 = vpop.f32.mrf.mxu0
    %v452 = vadd.f32 %v144, %v451
    %v453 = vpop.f32.mrf.mxu0
    %v454 = vadd.f32 %v148, %v453
    %v455 = vpop.f32.mrf.mxu0
    %v456 = vadd.f32 %v144, %v455
    %v457 = vpop.f32.mrf.mxu0
    %v458 = vadd.f32 %v148, %v457
    %459 = vmatprep.mubr.bf16.mxu0 0
    %460 = vmatmul.mubr.bf16.gmra.mxu0 %v226
    %v461 = vpop.f32.mrf.mxu0
    %v462 = vadd.f32 %v144, %v461
    %v463 = vpop.f32.mrf.mxu0
    %v464 = vadd.f32 %v148, %v463
    %v465 = vpop.f32.mrf.mxu0
    %v466 = vadd.f32 %v144, %v465
    %v467 = vpop.f32.mrf.mxu0
    %v468 = vadd.f32 %v148, %v467
    %469 = vmatprep.mubr.bf16.mxu0 0
    %470 = vmatmul.mubr.bf16.gmra.mxu0 %v227
    %v471 = vpop.f32.mrf.mxu0
    %v472 = vadd.f32 %v144, %v471
    %v473 = vpop.f32.mrf.mxu0
    %v474 = vadd.f32 %v148, %v473
    %v475 = vpop.f32.mrf.mxu0
    %v476 = vadd.f32 %v144, %v475
    %v477 = vpop.f32.mrf.mxu0
    %v478 = vadd.f32 %v148, %v477
    %479 = vmatprep.mubr.bf16.mxu0 0
    %480 = vmatmul.mubr.bf16.gmra.mxu0 %v228
    %v481 = vpop.f32.mrf.mxu0
    %v482 = vadd.f32 %v144, %v481
    %v483 = vpop.f32.mrf.mxu0
    %v484 = vadd.f32 %v148, %v483
    %v485 = vpop.f32.mrf.mxu0
    %v486 = vadd.f32 %v144, %v485
    %v487 = vpop.f32.mrf.mxu0
    %v488 = vadd.f32 %v148, %v487
    %489 = vmatprep.mubr.bf16.mxu0 0
    %490 = vmatmul.mubr.bf16.gmra.mxu0 %v229
    %v491 = vpop.f32.mrf.mxu0
    %v492 = vadd.f32 %v144, %v491
    %v493 = vpop.f32.mrf.mxu0
    %v494 = vadd.f32 %v148, %v493
    %v495 = vpop.f32.mrf.mxu0
    %v496 = vadd.f32 %v144, %v495
    %v497 = vpop.f32.mrf.mxu0
    %v498 = vadd.f32 %v148, %v497
    %499 = vmatprep.mubr.bf16.mxu0 0
    %500 = vmatmul.mubr.bf16.gmra.mxu0 %v230
    %v501 = vpop.f32.mrf.mxu0
    %v502 = vadd.f32 %v144, %v501
    %v503 = vpop.f32.mrf.mxu0
    %v504 = vadd.f32 %v148, %v503
    %v505 = vpop.f32.mrf.mxu0
    %v506 = vadd.f32 %v144, %v505
    %v507 = vpop.f32.mrf.mxu0
    %v508 = vadd.f32 %v148, %v507
    %509 = vmatprep.mubr.bf16.mxu0 0
    %510 = vmatmul.mubr.bf16.gmra.mxu0 %v231
    %v511 = vpop.f32.mrf.mxu0
    %v512 = vadd.f32 %v144, %v511
    %v513 = vpop.f32.mrf.mxu0
    %v514 = vadd.f32 %v148, %v513
    %v515 = vpop.f32.mrf.mxu0
    %v516 = vadd.f32 %v144, %v515
    %v517 = vpop.f32.mrf.mxu0
    %v518 = vadd.f32 %v148, %v517
    %519 = vmatprep.mubr.bf16.mxu0 0
    %520 = vmatmul.mubr.bf16.gmra.mxu0 %v232
    %v521 = vpop.f32.mrf.mxu0
    %v522 = vadd.f32 %v144, %v521
    %v523 = vpop.f32.mrf.mxu0
    %v524 = vadd.f32 %v148, %v523
    %v525 = vpop.f32.mrf.mxu0
    %v526 = vadd.f32 %v144, %v525
    %v527 = vpop.f32.mrf.mxu0
    %v528 = vadd.f32 %v148, %v527
    %529 = vmatprep.mubr.bf16.mxu0 0
    %530 = vmatmul.mubr.bf16.gmra.mxu0 %v233
    %v531 = vpop.f32.mrf.mxu0
    %v532 = vadd.f32 %v144, %v531
    %v533 = vpop.f32.mrf.mxu0
    %v534 = vadd.f32 %v148, %v533
    %v535 = vpop.f32.mrf.mxu0
    %v536 = vadd.f32 %v144, %v535
    %v537 = vpop.f32.mrf.mxu0
    %v538 = vadd.f32 %v148, %v537
    %539 = vmatprep.mubr.bf16.mxu0 0
    %540 = vmatmul.mubr.bf16.gmra.mxu0 %v234
    %v541 = vpop.f32.mrf.mxu0
    %v542 = vadd.f32 %v144, %v541
    %v543 = vpop.f32.mrf.mxu0
    %v544 = vadd.f32 %v148, %v543
    %v545 = vpop.f32.mrf.mxu0
    %v546 = vadd.f32 %v144, %v545
    %v547 = vpop.f32.mrf.mxu0
    %v548 = vadd.f32 %v148, %v547
    %549 = vmatprep.mubr.bf16.mxu0 0
    %550 = vmatmul.mubr.bf16.gmra.mxu0 %v235
    %v551 = vpop.f32.mrf.mxu0
    %v552 = vadd.f32 %v144, %v551
    %v553 = vpop.f32.mrf.mxu0
    %v554 = vadd.f32 %v148, %v553
    %v555 = vpop.f32.mrf.mxu0
    %v556 = vadd.f32 %v144, %v555
    %v557 = vpop.f32.mrf.mxu0
    %v558 = vadd.f32 %v148, %v557
    %559 = vmatprep.mubr.bf16.mxu0 0
    %560 = vmatmul.mubr.bf16.gmra.mxu0 %v236
    %v561 = vpop.f32.mrf.mxu0
    %v562 = vadd.f32 %v144, %v561
    %v563 = vpop.f32.mrf.mxu0
    %v564 = vadd.f32 %v148, %v563
    %v565 = vpop.f32.mrf.mxu0
    %v566 = vadd.f32 %v144, %v565
    %v567 = vpop.f32.mrf.mxu0
    %v568 = vadd.f32 %v148, %v567
    %569 = vmatprep.mubr.bf16.mxu0 0
    %570 = vmatmul.mubr.bf16.gmra.mxu0 %v237
    %v571 = vpop.f32.mrf.mxu0
    %v572 = vadd.f32 %v144, %v571
    %v573 = vpop.f32.mrf.mxu0
    %v574 = vadd.f32 %v148, %v573
    %v575 = vpop.f32.mrf.mxu0
    %v576 = vadd.f32 %v144, %v575
    %v577 = vpop.f32.mrf.mxu0
    %v578 = vadd.f32 %v148, %v577
    %579 = vmatprep.mubr.bf16.mxu0 0
    %580 = vmatmul.mubr.bf16.gmra.mxu0 %v238
    %v581 = vpop.f32.mrf.mxu0
    %v582 = vadd.f32 %v144, %v581
    %v583 = vpop.f32.mrf.mxu0
    %v584 = vadd.f32 %v148, %v583
    %v585 = vpop.f32.mrf.mxu0
    %v586 = vadd.f32 %v144, %v585
    %v587 = vpop.f32.mrf.mxu0
    %v588 = vadd.f32 %v148, %v587
    %589 = vmatprep.mubr.bf16.mxu0 0
    %590 = vmatmul.mubr.bf16.gmra.mxu0 %v239
    %v591 = vpop.f32.mrf.mxu0
    %v592 = vadd.f32 %v144, %v591
    %v593 = vpop.f32.mrf.mxu0
    %v594 = vadd.f32 %v148, %v593
    %v595 = vpop.f32.mrf.mxu0
    %v596 = vadd.f32 %v144, %v595
    %v597 = vpop.f32.mrf.mxu0
    %v598 = vadd.f32 %v148, %v597
    %599 = vmatprep.mubr.bf16.mxu0 0
    %600 = vmatmul.mubr.bf16.gmra.mxu0 %v240
    %v601 = vpop.f32.mrf.mxu0
    %v602 = vadd.f32 %v144, %v601
    %v603 = vpop.f32.mrf.mxu0
    %v604 = vadd.f32 %v148, %v603
    %v605 = vpop.f32.mrf.mxu0
    %v606 = vadd.f32 %v144, %v605
    %v607 = vpop.f32.mrf.mxu0
    %v608 = vadd.f32 %v148, %v607
    %609 = vdwg.mxu0
    %610 = vmatprep.subr.bf16.mxu0 %v384
    %611 = vmatpush1.bf16.msra.mxu0 %v383
    %612 = vmatprep.subr.bf16.mxu0 %v380
    %613 = vmatpush1.bf16.msra.mxu0 %v379
    %614 = vmatprep.subr.bf16.mxu0 %v376
    %615 = vmatpush1.bf16.msra.mxu0 %v375
    %616 = vmatprep.subr.bf16.mxu0 %v372
    %617 = vmatpush1.bf16.msra.mxu0 %v371
    %618 = vmatprep.subr.bf16.mxu0 %v368
    %619 = vmatpush1.bf16.msra.mxu0 %v367
    %620 = vmatprep.subr.bf16.mxu0 %v364
    %621 = vmatpush1.bf16.msra.mxu0 %v363
    %622 = vmatprep.subr.bf16.mxu0 %v360
    %623 = vmatpush1.bf16.msra.mxu0 %v359
    %624 = vmatprep.subr.bf16.mxu0 %v356
    %625 = vmatpush1.bf16.msra.mxu0 %v355
    %626 = vmatprep.subr.bf16.mxu0 0
    %627 = vmatpush2.bf16.msra.mxu0 0
    %628 = vmatprep.subr.bf16.mxu0 0
    %629 = vmatpush2.bf16.msra.mxu0 0
    %630 = vmatprep.subr.bf16.mxu0 0
    %631 = vmatpush2.bf16.msra.mxu0 0
    %632 = vmatprep.subr.bf16.mxu0 0
    %633 = vmatpush2.bf16.msra.mxu0 0
    %634 = vmatprep.subr.bf16.mxu0 0
    %635 = vmatpush2.bf16.msra.mxu0 0
    %636 = vmatprep.subr.bf16.mxu0 0
    %637 = vmatpush2.bf16.msra.mxu0 0
    %638 = vmatprep.subr.bf16.mxu0 0
    %639 = vmatpush2.bf16.msra.mxu0 0
    %640 = vmatprep.subr.bf16.mxu0 0
    %641 = vmatpush2.bf16.msra.mxu0 0
    %642 = vmatprep.mubr.bf16.mxu0 0
    %643 = vmatmul.mubr.bf16.gmra.mxu0 %v225
    %v644 = vpop.f32.mrf.mxu0
    %v645 = vadd.f32 %v152, %v644
    %v646 = vpop.f32.mrf.mxu0
    %v647 = vadd.f32 %v156, %v646
    %v648 = vpop.f32.mrf.mxu0
    %v649 = vadd.f32 %v152, %v648
    %v650 = vpop.f32.mrf.mxu0
    %v651 = vadd.f32 %v156, %v650
    %652 = vmatprep.mubr.bf16.mxu0 0
    %653 = vmatmul.mubr.bf16.gmra.mxu0 %v226
    %v654 = vpop.f32.mrf.mxu0
    %v655 = vadd.f32 %v152, %v654
    %v656 = vpop.f32.mrf.mxu0
    %v657 = vadd.f32 %v156, %v656
    %v658 = vpop.f32.mrf.mxu0
    %v659 = vadd.f32 %v152, %v658
    %v660 = vpop.f32.mrf.mxu0
    %v661 = vadd.f32 %v156, %v660
    %662 = vmatprep.mubr.bf16.mxu0 0
    %663 = vmatmul.mubr.bf16.gmra.mxu0 %v227
    %v664 = vpop.f32.mrf.mxu0
    %v665 = vadd.f32 %v152, %v664
    %v666 = vpop.f32.mrf.mxu0
    %v667 = vadd.f32 %v156, %v666
    %v668 = vpop.f32.mrf.mxu0
    %v669 = vadd.f32 %v152, %v668
    %v670 = vpop.f32.mrf.mxu0
    %v671 = vadd.f32 %v156, %v670
    %672 = vmatprep.mubr.bf16.mxu0 0
    %673 = vmatmul.mubr.bf16.gmra.mxu0 %v228
    %v674 = vpop.f32.mrf.mxu0
    %v675 = vadd.f32 %v152, %v674
    %v676 = vpop.f32.mrf.mxu0
    %v677 = vadd.f32 %v156, %v676
    %v678 = vpop.f32.mrf.mxu0
    %v679 = vadd.f32 %v152, %v678
    %v680 = vpop.f32.mrf.mxu0
    %v681 = vadd.f32 %v156, %v680
    %682 = vmatprep.mubr.bf16.mxu0 0
    %683 = vmatmul.mubr.bf16.gmra.mxu0 %v229
    %v684 = vpop.f32.mrf.mxu0
    %v685 = vadd.f32 %v152, %v684
    %v686 = vpop.f32.mrf.mxu0
    %v687 = vadd.f32 %v156, %v686
    %v688 = vpop.f32.mrf.mxu0
    %v689 = vadd.f32 %v152, %v688
    %v690 = vpop.f32.mrf.mxu0
    %v691 = vadd.f32 %v156, %v690
    %692 = vmatprep.mubr.bf16.mxu0 0
    %693 = vmatmul.mubr.bf16.gmra.mxu0 %v230
    %v694 = vpop.f32.mrf.mxu0
    %v695 = vadd.f32 %v152, %v694
    %v696 = vpop.f32.mrf.mxu0
    %v697 = vadd.f32 %v156, %v696
    %v698 = vpop.f32.mrf.mxu0
    %v699 = vadd.f32 %v152, %v698
    %v700 = vpop.f32.mrf.mxu0
    %v701 = vadd.f32 %v156, %v700
    %702 = vmatprep.mubr.bf16.mxu0 0
    %703 = vmatmul.mubr.bf16.gmra.mxu0 %v231
    %v704 = vpop.f32.mrf.mxu0
    %v705 = vadd.f32 %v152, %v704
    %v706 = vpop.f32.mrf.mxu0
    %v707 = vadd.f32 %v156, %v706
    %v708 = vpop.f32.mrf.mxu0
    %v709 = vadd.f32 %v152, %v708
    %v710 = vpop.f32.mrf.mxu0
    %v711 = vadd.f32 %v156, %v710
    %712 = vmatprep.mubr.bf16.mxu0 0
    %713 = vmatmul.mubr.bf16.gmra.mxu0 %v232
    %v714 = vpop.f32.mrf.mxu0
    %v715 = vadd.f32 %v152, %v714
    %v716 = vpop.f32.mrf.mxu0
    %v717 = vadd.f32 %v156, %v716
    %v718 = vpop.f32.mrf.mxu0
    %v719 = vadd.f32 %v152, %v718
    %v720 = vpop.f32.mrf.mxu0
    %v721 = vadd.f32 %v156, %v720
    %722 = vmatprep.mubr.bf16.mxu0 0
    %723 = vmatmul.mubr.bf16.gmra.mxu0 %v233
    %v724 = vpop.f32.mrf.mxu0
    %v725 = vadd.f32 %v152, %v724
    %v726 = vpop.f32.mrf.mxu0
    %v727 = vadd.f32 %v156, %v726
    %v728 = vpop.f32.mrf.mxu0
    %v729 = vadd.f32 %v152, %v728
    %v730 = vpop.f32.mrf.mxu0
    %v731 = vadd.f32 %v156, %v730
    %732 = vmatprep.mubr.bf16.mxu0 0
    %733 = vmatmul.mubr.bf16.gmra.mxu0 %v234
    %v734 = vpop.f32.mrf.mxu0
    %v735 = vadd.f32 %v152, %v734
    %v736 = vpop.f32.mrf.mxu0
    %v737 = vadd.f32 %v156, %v736
    %v738 = vpop.f32.mrf.mxu0
    %v739 = vadd.f32 %v152, %v738
    %v740 = vpop.f32.mrf.mxu0
    %v741 = vadd.f32 %v156, %v740
    %742 = vmatprep.mubr.bf16.mxu0 0
    %743 = vmatmul.mubr.bf16.gmra.mxu0 %v235
    %v744 = vpop.f32.mrf.mxu0
    %v745 = vadd.f32 %v152, %v744
    %v746 = vpop.f32.mrf.mxu0
    %v747 = vadd.f32 %v156, %v746
    %v748 = vpop.f32.mrf.mxu0
    %v749 = vadd.f32 %v152, %v748
    %v750 = vpop.f32.mrf.mxu0
    %v751 = vadd.f32 %v156, %v750
    %752 = vmatprep.mubr.bf16.mxu0 0
    %753 = vmatmul.mubr.bf16.gmra.mxu0 %v236
    %v754 = vpop.f32.mrf.mxu0
    %v755 = vadd.f32 %v152, %v754
    %v756 = vpop.f32.mrf.mxu0
    %v757 = vadd.f32 %v156, %v756
    %v758 = vpop.f32.mrf.mxu0
    %v759 = vadd.f32 %v152, %v758
    %v760 = vpop.f32.mrf.mxu0
    %v761 = vadd.f32 %v156, %v760
    %762 = vmatprep.mubr.bf16.mxu0 0
    %763 = vmatmul.mubr.bf16.gmra.mxu0 %v237
    %v764 = vpop.f32.mrf.mxu0
    %v765 = vadd.f32 %v152, %v764
    %v766 = vpop.f32.mrf.mxu0
    %v767 = vadd.f32 %v156, %v766
    %v768 = vpop.f32.mrf.mxu0
    %v769 = vadd.f32 %v152, %v768
    %v770 = vpop.f32.mrf.mxu0
    %v771 = vadd.f32 %v156, %v770
    %772 = vmatprep.mubr.bf16.mxu0 0
    %773 = vmatmul.mubr.bf16.gmra.mxu0 %v238
    %v774 = vpop.f32.mrf.mxu0
    %v775 = vadd.f32 %v152, %v774
    %v776 = vpop.f32.mrf.mxu0
    %v777 = vadd.f32 %v156, %v776
    %v778 = vpop.f32.mrf.mxu0
    %v779 = vadd.f32 %v152, %v778
    %v780 = vpop.f32.mrf.mxu0
    %v781 = vadd.f32 %v156, %v780
    %782 = vmatprep.mubr.bf16.mxu0 0
    %783 = vmatmul.mubr.bf16.gmra.mxu0 %v239
    %v784 = vpop.f32.mrf.mxu0
    %v785 = vadd.f32 %v152, %v784
    %v786 = vpop.f32.mrf.mxu0
    %v787 = vadd.f32 %v156, %v786
    %v788 = vpop.f32.mrf.mxu0
    %v789 = vadd.f32 %v152, %v788
    %v790 = vpop.f32.mrf.mxu0
    %v791 = vadd.f32 %v156, %v790
    %792 = vmatprep.mubr.bf16.mxu0 0
    %793 = vmatmul.mubr.bf16.gmra.mxu0 %v240
    %v794 = vpop.f32.mrf.mxu0
    %v795 = vadd.f32 %v152, %v794
    %v796 = vpop.f32.mrf.mxu0
    %v797 = vadd.f32 %v156, %v796
    %v798 = vpop.f32.mrf.mxu0
    %v799 = vadd.f32 %v152, %v798
    %v800 = vpop.f32.mrf.mxu0
    %v801 = vadd.f32 %v156, %v800
    %802 = vdwg.mxu0
    %v803 = vmul.f32 %v452, 0.5
    %v804 = vmul.f32 %v454, 0.5
    %v805 = vmul.f32 %v645, 0.5
    %v806 = vmul.f32 %v647, 0.5
    %v807 = vmul.f32 %v456, 0.5
    %v808 = vmul.f32 %v458, 0.5
    %v809 = vmul.f32 %v649, 0.5
    %v810 = vmul.f32 %v651, 0.5
    %v811 = vmul.f32 %v462, 0.5
    %v812 = vmul.f32 %v464, 0.5
    %v813 = vmul.f32 %v655, 0.5
    %v814 = vmul.f32 %v657, 0.5
    %v815 = vmul.f32 %v466, 0.5
    %v816 = vmul.f32 %v468, 0.5
    %v817 = vmul.f32 %v659, 0.5
    %v818 = vmul.f32 %v661, 0.5
    %v819 = vmul.f32 %v472, 0.5
    %v820 = vmul.f32 %v474, 0.5
    %v821 = vmul.f32 %v665, 0.5
    %v822 = vmul.f32 %v667, 0.5
    %v823 = vmul.f32 %v476, 0.5
    %v824 = vmul.f32 %v478, 0.5
    %v825 = vmul.f32 %v669, 0.5
    %v826 = vmul.f32 %v671, 0.5
    %v827 = vmul.f32 %v482, 0.5
    %v828 = vmul.f32 %v484, 0.5
    %v829 = vmul.f32 %v675, 0.5
    %v830 = vmul.f32 %v677, 0.5
    %v831 = vmul.f32 %v486, 0.5
    %v832 = vmul.f32 %v488, 0.5
    %v833 = vmul.f32 %v679, 0.5
    %v834 = vmul.f32 %v681, 0.5
    %v835 = vmul.f32 %v492, 0.5
    %v836 = vmul.f32 %v494, 0.5
    %v837 = vmul.f32 %v685, 0.5
    %v838 = vmul.f32 %v687, 0.5
    %v839 = vmul.f32 %v496, 0.5
    %v840 = vmul.f32 %v498, 0.5
    %v841 = vmul.f32 %v689, 0.5
    %v842 = vmul.f32 %v691, 0.5
    %v843 = vmul.f32 %v502, 0.5
    %v844 = vmul.f32 %v504, 0.5
    %v845 = vmul.f32 %v695, 0.5
    %v846 = vmul.f32 %v697, 0.5
    %v847 = vmul.f32 %v506, 0.5
    %v848 = vmul.f32 %v508, 0.5
    %v849 = vmul.f32 %v699, 0.5
    %v850 = vmul.f32 %v701, 0.5
    %v851 = vmul.f32 %v512, 0.5
    %v852 = vmul.f32 %v514, 0.5
    %v853 = vmul.f32 %v705, 0.5
    %v854 = vmul.f32 %v707, 0.5
    %v855 = vmul.f32 %v516, 0.5
    %v856 = vmul.f32 %v518, 0.5
    %v857 = vmul.f32 %v709, 0.5
    %v858 = vmul.f32 %v711, 0.5
    %v859 = vmul.f32 %v522, 0.5
    %v860 = vmul.f32 %v524, 0.5
    %v861 = vmul.f32 %v715, 0.5
    %v862 = vmul.f32 %v717, 0.5
    %v863 = vmul.f32 %v526, 0.5
    %v864 = vmul.f32 %v528, 0.5
    %v865 = vmul.f32 %v719, 0.5
    %v866 = vmul.f32 %v721, 0.5
    %v867 = vmul.f32 %v532, 0.5
    %v868 = vmul.f32 %v534, 0.5
    %v869 = vmul.f32 %v725, 0.5
    %v870 = vmul.f32 %v727, 0.5
    %v871 = vmul.f32 %v536, 0.5
    %v872 = vmul.f32 %v538, 0.5
    %v873 = vmul.f32 %v729, 0.5
    %v874 = vmul.f32 %v731, 0.5
    %v875 = vmul.f32 %v542, 0.5
    %v876 = vmul.f32 %v544, 0.5
    %v877 = vmul.f32 %v735, 0.5
    %v878 = vmul.f32 %v737, 0.5
    %v879 = vmul.f32 %v546, 0.5
    %v880 = vmul.f32 %v548, 0.5
    %v881 = vmul.f32 %v739, 0.5
    %v882 = vmul.f32 %v741, 0.5
    %v883 = vmul.f32 %v552, 0.5
    %v884 = vmul.f32 %v554, 0.5
    %v885 = vmul.f32 %v745, 0.5
    %v886 = vmul.f32 %v747, 0.5
    %v887 = vmul.f32 %v556, 0.5
    %v888 = vmul.f32 %v558, 0.5
    %v889 = vmul.f32 %v749, 0.5
    %v890 = vmul.f32 %v751, 0.5
    %v891 = vmul.f32 %v562, 0.5
    %v892 = vmul.f32 %v564, 0.5
    %v893 = vmul.f32 %v755, 0.5
    %v894 = vmul.f32 %v757, 0.5
    %v895 = vmul.f32 %v566, 0.5
    %v896 = vmul.f32 %v568, 0.5
    %v897 = vmul.f32 %v759, 0.5
    %v898 = vmul.f32 %v761, 0.5
    %v899 = vmul.f32 %v572, 0.5
    %v900 = vmul.f32 %v574, 0.5
    %v901 = vmul.f32 %v765, 0.5
    %v902 = vmul.f32 %v767, 0.5
    %v903 = vmul.f32 %v576, 0.5
    %v904 = vmul.f32 %v578, 0.5
    %v905 = vmul.f32 %v769, 0.5
    %v906 = vmul.f32 %v771, 0.5
    %v907 = vmul.f32 %v582, 0.5
    %v908 = vmul.f32 %v584, 0.5
    %v909 = vmul.f32 %v775, 0.5
    %v910 = vmul.f32 %v777, 0.5
    %v911 = vmul.f32 %v586, 0.5
    %v912 = vmul.f32 %v588, 0.5
    %v913 = vmul.f32 %v779, 0.5
    %v914 = vmul.f32 %v781, 0.5
    %v915 = vmul.f32 %v592, 0.5
    %v916 = vmul.f32 %v594, 0.5
    %v917 = vmul.f32 %v785, 0.5
    %v918 = vmul.f32 %v787, 0.5
    %v919 = vmul.f32 %v596, 0.5
    %v920 = vmul.f32 %v598, 0.5
    %v921 = vmul.f32 %v789, 0.5
    %v922 = vmul.f32 %v791, 0.5
    %v923 = vmul.f32 %v602, 0.5
    %v924 = vmul.f32 %v604, 0.5
    %v925 = vmul.f32 %v795, 0.5
    %v926 = vmul.f32 %v797, 0.5
    %v927 = vmul.f32 %v606, 0.5
    %v928 = vmul.f32 %v608, 0.5
    %v929 = vmul.f32 %v799, 0.5
    %v930 = vmul.f32 %v801, 0.5
    %v931 = vmul.f32 %v452, 0.70710677
    %v932 = vmul.f32 %v454, 0.70710677
    %v933 = vmul.f32 %v645, 0.70710677
    %v934 = vmul.f32 %v647, 0.70710677
    %v935 = vmul.f32 %v456, 0.70710677
    %v936 = vmul.f32 %v458, 0.70710677
    %v937 = vmul.f32 %v649, 0.70710677
    %v938 = vmul.f32 %v651, 0.70710677
    %v939 = vmul.f32 %v462, 0.70710677
    %v940 = vmul.f32 %v464, 0.70710677
    %v941 = vmul.f32 %v655, 0.70710677
    %v942 = vmul.f32 %v657, 0.70710677
    %v943 = vmul.f32 %v466, 0.70710677
    %v944 = vmul.f32 %v468, 0.70710677
    %v945 = vmul.f32 %v659, 0.70710677
    %v946 = vmul.f32 %v661, 0.70710677
    %v947 = vmul.f32 %v472, 0.70710677
    %v948 = vmul.f32 %v474, 0.70710677
    %v949 = vmul.f32 %v665, 0.70710677
    %v950 = vmul.f32 %v667, 0.70710677
    %v951 = vmul.f32 %v476, 0.70710677
    %v952 = vmul.f32 %v478, 0.70710677
    %v953 = vmul.f32 %v669, 0.70710677
    %v954 = vmul.f32 %v671, 0.70710677
    %v955 = vmul.f32 %v482, 0.70710677
    %v956 = vmul.f32 %v484, 0.70710677
    %v957 = vmul.f32 %v675, 0.70710677
    %v958 = vmul.f32 %v677, 0.70710677
    %v959 = vmul.f32 %v486, 0.70710677
    %v960 = vmul.f32 %v488, 0.70710677
    %v961 = vmul.f32 %v679, 0.70710677
    %v962 = vmul.f32 %v681, 0.70710677
    %v963 = vmul.f32 %v492, 0.70710677
    %v964 = vmul.f32 %v494, 0.70710677
    %v965 = vmul.f32 %v685, 0.70710677
    %v966 = vmul.f32 %v687, 0.70710677
    %v967 = vmul.f32 %v496, 0.70710677
    %v968 = vmul.f32 %v498, 0.70710677
    %v969 = vmul.f32 %v689, 0.70710677
    %v970 = vmul.f32 %v691, 0.70710677
    %v971 = vmul.f32 %v502, 0.70710677
    %v972 = vmul.f32 %v504, 0.70710677
    %v973 = vmul.f32 %v695, 0.70710677
    %v974 = vmul.f32 %v697, 0.70710677
    %v975 = vmul.f32 %v506, 0.70710677
    %v976 = vmul.f32 %v508, 0.70710677
    %v977 = vmul.f32 %v699, 0.70710677
    %v978 = vmul.f32 %v701, 0.70710677
    %v979 = vmul.f32 %v512, 0.70710677
    %v980 = vmul.f32 %v514, 0.70710677
    %v981 = vmul.f32 %v705, 0.70710677
    %v982 = vmul.f32 %v707, 0.70710677
    %v983 = vmul.f32 %v516, 0.70710677
    %v984 = vmul.f32 %v518, 0.70710677
    %v985 = vmul.f32 %v709, 0.70710677
    %v986 = vmul.f32 %v711, 0.70710677
    %v987 = vmul.f32 %v522, 0.70710677
    %v988 = vmul.f32 %v524, 0.70710677
    %v989 = vmul.f32 %v715, 0.70710677
    %v990 = vmul.f32 %v717, 0.70710677
    %v991 = vmul.f32 %v526, 0.70710677
    %v992 = vmul.f32 %v528, 0.70710677
    %v993 = vmul.f32 %v719, 0.70710677
    %v994 = vmul.f32 %v721, 0.70710677
    %v995 = vmul.f32 %v532, 0.70710677
    %v996 = vmul.f32 %v534, 0.70710677
    %v997 = vmul.f32 %v725, 0.70710677
    %v998 = vmul.f32 %v727, 0.70710677
    %v999 = vmul.f32 %v536, 0.70710677
    %v1000 = vmul.f32 %v538, 0.70710677
    %v1001 = vmul.f32 %v729, 0.70710677
    %v1002 = vmul.f32 %v731, 0.70710677
    %v1003 = vmul.f32 %v542, 0.70710677
    %v1004 = vmul.f32 %v544, 0.70710677
    %v1005 = vmul.f32 %v735, 0.70710677
    %v1006 = vmul.f32 %v737, 0.70710677
    %v1007 = vmul.f32 %v546, 0.70710677
    %v1008 = vmul.f32 %v548, 0.70710677
    %v1009 = vmul.f32 %v739, 0.70710677
    %v1010 = vmul.f32 %v741, 0.70710677
    %v1011 = vmul.f32 %v552, 0.70710677
    %v1012 = vmul.f32 %v554, 0.70710677
    %v1013 = vmul.f32 %v745, 0.70710677
    %v1014 = vmul.f32 %v747, 0.70710677
    %v1015 = vmul.f32 %v556, 0.70710677
    %v1016 = vmul.f32 %v558, 0.70710677
    %v1017 = vmul.f32 %v749, 0.70710677
    %v1018 = vmul.f32 %v751, 0.70710677
    %v1019 = vmul.f32 %v562, 0.70710677
    %v1020 = vmul.f32 %v564, 0.70710677
    %v1021 = vmul.f32 %v755, 0.70710677
    %v1022 = vmul.f32 %v757, 0.70710677
    %v1023 = vmul.f32 %v566, 0.70710677
    %v1024 = vmul.f32 %v568, 0.70710677
    %v1025 = vmul.f32 %v759, 0.70710677
    %v1026 = vmul.f32 %v761, 0.70710677
    %v1027 = vmul.f32 %v572, 0.70710677
    %v1028 = vmul.f32 %v574, 0.70710677
    %v1029 = vmul.f32 %v765, 0.70710677
    %v1030 = vmul.f32 %v767, 0.70710677
    %v1031 = vmul.f32 %v576, 0.70710677
    %v1032 = vmul.f32 %v578, 0.70710677
    %v1033 = vmul.f32 %v769, 0.70710677
    %v1034 = vmul.f32 %v771, 0.70710677
    %v1035 = vmul.f32 %v582, 0.70710677
    %v1036 = vmul.f32 %v584, 0.70710677
    %v1037 = vmul.f32 %v775, 0.70710677
    %v1038 = vmul.f32 %v777, 0.70710677
    %v1039 = vmul.f32 %v586, 0.70710677
    %v1040 = vmul.f32 %v588, 0.70710677
    %v1041 = vmul.f32 %v779, 0.70710677
    %v1042 = vmul.f32 %v781, 0.70710677
    %v1043 = vmul.f32 %v592, 0.70710677
    %v1044 = vmul.f32 %v594, 0.70710677
    %v1045 = vmul.f32 %v785, 0.70710677
    %v1046 = vmul.f32 %v787, 0.70710677
    %v1047 = vmul.f32 %v596, 0.70710677
    %v1048 = vmul.f32 %v598, 0.70710677
    %v1049 = vmul.f32 %v789, 0.70710677
    %v1050 = vmul.f32 %v791, 0.70710677
    %v1051 = vmul.f32 %v602, 0.70710677
    %v1052 = vmul.f32 %v604, 0.70710677
    %v1053 = vmul.f32 %v795, 0.70710677
    %v1054 = vmul.f32 %v797, 0.70710677
    %v1055 = vmul.f32 %v606, 0.70710677
    %v1056 = vmul.f32 %v608, 0.70710677
    %v1057 = vmul.f32 %v799, 0.70710677
    %v1058 = vmul.f32 %v801, 0.70710677
    %v1059 = verf.f32.pop %v931
    %v1060 = verf.f32.pop %v932
    %v1061 = verf.f32.pop %v933
    %v1062 = verf.f32.pop %v934
    %v1063 = verf.f32.pop %v935
    %v1064 = verf.f32.pop %v936
    %v1065 = verf.f32.pop %v937
    %v1066 = verf.f32.pop %v938
    %v1067 = verf.f32.pop %v939
    %v1068 = verf.f32.pop %v940
    %v1069 = verf.f32.pop %v941
    %v1070 = verf.f32.pop %v942
    %v1071 = verf.f32.pop %v943
    %v1072 = verf.f32.pop %v944
    %v1073 = verf.f32.pop %v945
    %v1074 = verf.f32.pop %v946
    %v1075 = verf.f32.pop %v947
    %v1076 = verf.f32.pop %v948
    %v1077 = verf.f32.pop %v949
    %v1078 = verf.f32.pop %v950
    %v1079 = verf.f32.pop %v951
    %v1080 = verf.f32.pop %v952
    %v1081 = verf.f32.pop %v953
    %v1082 = verf.f32.pop %v954
    %v1083 = verf.f32.pop %v955
    %v1084 = verf.f32.pop %v956
    %v1085 = verf.f32.pop %v957
    %v1086 = verf.f32.pop %v958
    %v1087 = verf.f32.pop %v959
    %v1088 = verf.f32.pop %v960
    %v1089 = verf.f32.pop %v961
    %v1090 = verf.f32.pop %v962
    %v1091 = verf.f32.pop %v963
    %v1092 = verf.f32.pop %v964
    %v1093 = verf.f32.pop %v965
    %v1094 = verf.f32.pop %v966
    %v1095 = verf.f32.pop %v967
    %v1096 = verf.f32.pop %v968
    %v1097 = verf.f32.pop %v969
    %v1098 = verf.f32.pop %v970
    %v1099 = verf.f32.pop %v971
    %v1100 = verf.f32.pop %v972
    %v1101 = verf.f32.pop %v973
    %v1102 = verf.f32.pop %v974
    %v1103 = verf.f32.pop %v975
    %v1104 = verf.f32.pop %v976
    %v1105 = verf.f32.pop %v977
    %v1106 = verf.f32.pop %v978
    %v1107 = verf.f32.pop %v979
    %v1108 = verf.f32.pop %v980
    %v1109 = verf.f32.pop %v981
    %v1110 = verf.f32.pop %v982
    %v1111 = verf.f32.pop %v983
    %v1112 = verf.f32.pop %v984
    %v1113 = verf.f32.pop %v985
    %v1114 = verf.f32.pop %v986
    %v1115 = verf.f32.pop %v987
    %v1116 = verf.f32.pop %v988
    %v1117 = verf.f32.pop %v989
    %v1118 = verf.f32.pop %v990
    %v1119 = verf.f32.pop %v991
    %v1120 = verf.f32.pop %v992
    %v1121 = verf.f32.pop %v993
    %v1122 = verf.f32.pop %v994
    %v1123 = verf.f32.pop %v995
    %v1124 = verf.f32.pop %v996
    %v1125 = verf.f32.pop %v997
    %v1126 = verf.f32.pop %v998
    %v1127 = verf.f32.pop %v999
    %v1128 = verf.f32.pop %v1000
    %v1129 = verf.f32.pop %v1001
    %v1130 = verf.f32.pop %v1002
    %v1131 = verf.f32.pop %v1003
    %v1132 = verf.f32.pop %v1004
    %v1133 = verf.f32.pop %v1005
    %v1134 = verf.f32.pop %v1006
    %v1135 = verf.f32.pop %v1007
    %v1136 = verf.f32.pop %v1008
    %v1137 = verf.f32.pop %v1009
    %v1138 = verf.f32.pop %v1010
    %v1139 = verf.f32.pop %v1011
    %v1140 = verf.f32.pop %v1012
    %v1141 = verf.f32.pop %v1013
    %v1142 = verf.f32.pop %v1014
    %v1143 = verf.f32.pop %v1015
    %v1144 = verf.f32.pop %v1016
    %v1145 = verf.f32.pop %v1017
    %v1146 = verf.f32.pop %v1018
    %v1147 = verf.f32.pop %v1019
    %v1148 = verf.f32.pop %v1020
    %v1149 = verf.f32.pop %v1021
    %v1150 = verf.f32.pop %v1022
    %v1151 = verf.f32.pop %v1023
    %v1152 = verf.f32.pop %v1024
    %v1153 = verf.f32.pop %v1025
    %v1154 = verf.f32.pop %v1026
    %v1155 = verf.f32.pop %v1027
    %v1156 = verf.f32.pop %v1028
    %v1157 = verf.f32.pop %v1029
    %v1158 = verf.f32.pop %v1030
    %v1159 = verf.f32.pop %v1031
    %v1160 = verf.f32.pop %v1032
    %v1161 = verf.f32.pop %v1033
    %v1162 = verf.f32.pop %v1034
    %v1163 = verf.f32.pop %v1035
    %v1164 = verf.f32.pop %v1036
    %v1165 = verf.f32.pop %v1037
    %v1166 = verf.f32.pop %v1038
    %v1167 = verf.f32.pop %v1039
    %v1168 = verf.f32.pop %v1040
    %v1169 = verf.f32.pop %v1041
    %v1170 = verf.f32.pop %v1042
    %v1171 = verf.f32.pop %v1043
    %v1172 = verf.f32.pop %v1044
    %v1173 = verf.f32.pop %v1045
    %v1174 = verf.f32.pop %v1046
    %v1175 = verf.f32.pop %v1047
    %v1176 = verf.f32.pop %v1048
    %v1177 = verf.f32.pop %v1049
    %v1178 = verf.f32.pop %v1050
    %v1179 = verf.f32.pop %v1051
    %v1180 = verf.f32.pop %v1052
    %v1181 = verf.f32.pop %v1053
    %v1182 = verf.f32.pop %v1054
    %v1183 = verf.f32.pop %v1055
    %v1184 = verf.f32.pop %v1056
    %v1185 = verf.f32.pop %v1057
    %v1186 = verf.f32.pop %v1058
    %v1187 = vadd.f32 %v1059, 1.0
    %v1188 = vadd.f32 %v1060, 1.0
    %v1189 = vadd.f32 %v1061, 1.0
    %v1190 = vadd.f32 %v1062, 1.0
    %v1191 = vadd.f32 %v1063, 1.0
    %v1192 = vadd.f32 %v1064, 1.0
    %v1193 = vadd.f32 %v1065, 1.0
    %v1194 = vadd.f32 %v1066, 1.0
    %v1195 = vadd.f32 %v1067, 1.0
    %v1196 = vadd.f32 %v1068, 1.0
    %v1197 = vadd.f32 %v1069, 1.0
    %v1198 = vadd.f32 %v1070, 1.0
    %v1199 = vadd.f32 %v1071, 1.0
    %v1200 = vadd.f32 %v1072, 1.0
    %v1201 = vadd.f32 %v1073, 1.0
    %v1202 = vadd.f32 %v1074, 1.0
    %v1203 = vadd.f32 %v1075, 1.0
    %v1204 = vadd.f32 %v1076, 1.0
    %v1205 = vadd.f32 %v1077, 1.0
    %v1206 = vadd.f32 %v1078, 1.0
    %v1207 = vadd.f32 %v1079, 1.0
    %v1208 = vadd.f32 %v1080, 1.0
    %v1209 = vadd.f32 %v1081, 1.0
    %v1210 = vadd.f32 %v1082, 1.0
    %v1211 = vadd.f32 %v1083, 1.0
    %v1212 = vadd.f32 %v1084, 1.0
    %v1213 = vadd.f32 %v1085, 1.0
    %v1214 = vadd.f32 %v1086, 1.0
    %v1215 = vadd.f32 %v1087, 1.0
    %v1216 = vadd.f32 %v1088, 1.0
    %v1217 = vadd.f32 %v1089, 1.0
    %v1218 = vadd.f32 %v1090, 1.0
    %v1219 = vadd.f32 %v1091, 1.0
    %v1220 = vadd.f32 %v1092, 1.0
    %v1221 = vadd.f32 %v1093, 1.0
    %v1222 = vadd.f32 %v1094, 1.0
    %v1223 = vadd.f32 %v1095, 1.0
    %v1224 = vadd.f32 %v1096, 1.0
    %v1225 = vadd.f32 %v1097, 1.0
    %v1226 = vadd.f32 %v1098, 1.0
    %v1227 = vadd.f32 %v1099, 1.0
    %v1228 = vadd.f32 %v1100, 1.0
    %v1229 = vadd.f32 %v1101, 1.0
    %v1230 = vadd.f32 %v1102, 1.0
    %v1231 = vadd.f32 %v1103, 1.0
    %v1232 = vadd.f32 %v1104, 1.0
    %v1233 = vadd.f32 %v1105, 1.0
    %v1234 = vadd.f32 %v1106, 1.0
    %v1235 = vadd.f32 %v1107, 1.0
    %v1236 = vadd.f32 %v1108, 1.0
    %v1237 = vadd.f32 %v1109, 1.0
    %v1238 = vadd.f32 %v1110, 1.0
    %v1239 = vadd.f32 %v1111, 1.0
    %v1240 = vadd.f32 %v1112, 1.0
    %v1241 = vadd.f32 %v1113, 1.0
    %v1242 = vadd.f32 %v1114, 1.0
    %v1243 = vadd.f32 %v1115, 1.0
    %v1244 = vadd.f32 %v1116, 1.0
    %v1245 = vadd.f32 %v1117, 1.0
    %v1246 = vadd.f32 %v1118, 1.0
    %v1247 = vadd.f32 %v1119, 1.0
    %v1248 = vadd.f32 %v1120, 1.0
    %v1249 = vadd.f32 %v1121, 1.0
    %v1250 = vadd.f32 %v1122, 1.0
    %v1251 = vadd.f32 %v1123, 1.0
    %v1252 = vadd.f32 %v1124, 1.0
    %v1253 = vadd.f32 %v1125, 1.0
    %v1254 = vadd.f32 %v1126, 1.0
    %v1255 = vadd.f32 %v1127, 1.0
    %v1256 = vadd.f32 %v1128, 1.0
    %v1257 = vadd.f32 %v1129, 1.0
    %v1258 = vadd.f32 %v1130, 1.0
    %v1259 = vadd.f32 %v1131, 1.0
    %v1260 = vadd.f32 %v1132, 1.0
    %v1261 = vadd.f32 %v1133, 1.0
    %v1262 = vadd.f32 %v1134, 1.0
    %v1263 = vadd.f32 %v1135, 1.0
    %v1264 = vadd.f32 %v1136, 1.0
    %v1265 = vadd.f32 %v1137, 1.0
    %v1266 = vadd.f32 %v1138, 1.0
    %v1267 = vadd.f32 %v1139, 1.0
    %v1268 = vadd.f32 %v1140, 1.0
    %v1269 = vadd.f32 %v1141, 1.0
    %v1270 = vadd.f32 %v1142, 1.0
    %v1271 = vadd.f32 %v1143, 1.0
    %v1272 = vadd.f32 %v1144, 1.0
    %v1273 = vadd.f32 %v1145, 1.0
    %v1274 = vadd.f32 %v1146, 1.0
    %v1275 = vadd.f32 %v1147, 1.0
    %v1276 = vadd.f32 %v1148, 1.0
    %v1277 = vadd.f32 %v1149, 1.0
    %v1278 = vadd.f32 %v1150, 1.0
    %v1279 = vadd.f32 %v1151, 1.0
    %v1280 = vadd.f32 %v1152, 1.0
    %v1281 = vadd.f32 %v1153, 1.0
    %v1282 = vadd.f32 %v1154, 1.0
    %v1283 = vadd.f32 %v1155, 1.0
    %v1284 = vadd.f32 %v1156, 1.0
    %v1285 = vadd.f32 %v1157, 1.0
    %v1286 = vadd.f32 %v1158, 1.0
    %v1287 = vadd.f32 %v1159, 1.0
    %v1288 = vadd.f32 %v1160, 1.0
    %v1289 = vadd.f32 %v1161, 1.0
    %v1290 = vadd.f32 %v1162, 1.0
    %v1291 = vadd.f32 %v1163, 1.0
    %v1292 = vadd.f32 %v1164, 1.0
    %v1293 = vadd.f32 %v1165, 1.0
    %v1294 = vadd.f32 %v1166, 1.0
    %v1295 = vadd.f32 %v1167, 1.0
    %v1296 = vadd.f32 %v1168, 1.0
    %v1297 = vadd.f32 %v1169, 1.0
    %v1298 = vadd.f32 %v1170, 1.0
    %v1299 = vadd.f32 %v1171, 1.0
    %v1300 = vadd.f32 %v1172, 1.0
    %v1301 = vadd.f32 %v1173, 1.0
    %v1302 = vadd.f32 %v1174, 1.0
    %v1303 = vadd.f32 %v1175, 1.0
    %v1304 = vadd.f32 %v1176, 1.0
    %v1305 = vadd.f32 %v1177, 1.0
    %v1306 = vadd.f32 %v1178, 1.0
    %v1307 = vadd.f32 %v1179, 1.0
    %v1308 = vadd.f32 %v1180, 1.0
    %v1309 = vadd.f32 %v1181, 1.0
    %v1310 = vadd.f32 %v1182, 1.0
    %v1311 = vadd.f32 %v1183, 1.0
    %v1312 = vadd.f32 %v1184, 1.0
    %v1313 = vadd.f32 %v1185, 1.0
    %v1314 = vadd.f32 %v1186, 1.0
    %v1315 = vmul.f32 %v803, %v1187
    %v1316 = vmul.f32 %v804, %v1188
    %v1317 = vmul.f32 %v805, %v1189
    %v1318 = vmul.f32 %v806, %v1190
    %v1319 = vmul.f32 %v807, %v1191
    %v1320 = vmul.f32 %v808, %v1192
    %v1321 = vmul.f32 %v809, %v1193
    %v1322 = vmul.f32 %v810, %v1194
    %v1323 = vmul.f32 %v811, %v1195
    %v1324 = vmul.f32 %v812, %v1196
    %v1325 = vmul.f32 %v813, %v1197
    %v1326 = vmul.f32 %v814, %v1198
    %v1327 = vmul.f32 %v815, %v1199
    %v1328 = vmul.f32 %v816, %v1200
    %v1329 = vmul.f32 %v817, %v1201
    %v1330 = vmul.f32 %v818, %v1202
    %v1331 = vmul.f32 %v819, %v1203
    %v1332 = vmul.f32 %v820, %v1204
    %v1333 = vmul.f32 %v821, %v1205
    %v1334 = vmul.f32 %v822, %v1206
    %v1335 = vmul.f32 %v823, %v1207
    %v1336 = vmul.f32 %v824, %v1208
    %v1337 = vmul.f32 %v825, %v1209
    %v1338 = vmul.f32 %v826, %v1210
    %v1339 = vmul.f32 %v827, %v1211
    %v1340 = vmul.f32 %v828, %v1212
    %v1341 = vmul.f32 %v829, %v1213
    %v1342 = vmul.f32 %v830, %v1214
    %v1343 = vmul.f32 %v831, %v1215
    %v1344 = vmul.f32 %v832, %v1216
    %v1345 = vmul.f32 %v833, %v1217
    %v1346 = vmul.f32 %v834, %v1218
    %v1347 = vmul.f32 %v835, %v1219
    %v1348 = vmul.f32 %v836, %v1220
    %v1349 = vmul.f32 %v837, %v1221
    %v1350 = vmul.f32 %v838, %v1222
    %v1351 = vmul.f32 %v839, %v1223
    %v1352 = vmul.f32 %v840, %v1224
    %v1353 = vmul.f32 %v841, %v1225
    %v1354 = vmul.f32 %v842, %v1226
    %v1355 = vmul.f32 %v843, %v1227
    %v1356 = vmul.f32 %v844, %v1228
    %v1357 = vmul.f32 %v845, %v1229
    %v1358 = vmul.f32 %v846, %v1230
    %v1359 = vmul.f32 %v847, %v1231
    %v1360 = vmul.f32 %v848, %v1232
    %v1361 = vmul.f32 %v849, %v1233
    %v1362 = vmul.f32 %v850, %v1234
    %v1363 = vmul.f32 %v851, %v1235
    %v1364 = vmul.f32 %v852, %v1236
    %v1365 = vmul.f32 %v853, %v1237
    %v1366 = vmul.f32 %v854, %v1238
    %v1367 = vmul.f32 %v855, %v1239
    %v1368 = vmul.f32 %v856, %v1240
    %v1369 = vmul.f32 %v857, %v1241
    %v1370 = vmul.f32 %v858, %v1242
    %v1371 = vmul.f32 %v859, %v1243
    %v1372 = vmul.f32 %v860, %v1244
    %v1373 = vmul.f32 %v861, %v1245
    %v1374 = vmul.f32 %v862, %v1246
    %v1375 = vmul.f32 %v863, %v1247
    %v1376 = vmul.f32 %v864, %v1248
    %v1377 = vmul.f32 %v865, %v1249
    %v1378 = vmul.f32 %v866, %v1250
    %v1379 = vmul.f32 %v867, %v1251
    %v1380 = vmul.f32 %v868, %v1252
    %v1381 = vmul.f32 %v869, %v1253
    %v1382 = vmul.f32 %v870, %v1254
    %v1383 = vmul.f32 %v871, %v1255
    %v1384 = vmul.f32 %v872, %v1256
    %v1385 = vmul.f32 %v873, %v1257
    %v1386 = vmul.f32 %v874, %v1258
    %v1387 = vmul.f32 %v875, %v1259
    %v1388 = vmul.f32 %v876, %v1260
    %v1389 = vmul.f32 %v877, %v1261
    %v1390 = vmul.f32 %v878, %v1262
    %v1391 = vmul.f32 %v879, %v1263
    %v1392 = vmul.f32 %v880, %v1264
    %v1393 = vmul.f32 %v881, %v1265
    %v1394 = vmul.f32 %v882, %v1266
    %v1395 = vmul.f32 %v883, %v1267
    %v1396 = vmul.f32 %v884, %v1268
    %v1397 = vmul.f32 %v885, %v1269
    %v1398 = vmul.f32 %v886, %v1270
    %v1399 = vmul.f32 %v887, %v1271
    %v1400 = vmul.f32 %v888, %v1272
    %v1401 = vmul.f32 %v889, %v1273
    %v1402 = vmul.f32 %v890, %v1274
    %v1403 = vmul.f32 %v891, %v1275
    %v1404 = vmul.f32 %v892, %v1276
    %v1405 = vmul.f32 %v893, %v1277
    %v1406 = vmul.f32 %v894, %v1278
    %v1407 = vmul.f32 %v895, %v1279
    %v1408 = vmul.f32 %v896, %v1280
    %v1409 = vmul.f32 %v897, %v1281
    %v1410 = vmul.f32 %v898, %v1282
    %v1411 = vmul.f32 %v899, %v1283
    %v1412 = vmul.f32 %v900, %v1284
    %v1413 = vmul.f32 %v901, %v1285
    %v1414 = vmul.f32 %v902, %v1286
    %v1415 = vmul.f32 %v903, %v1287
    %v1416 = vmul.f32 %v904, %v1288
    %v1417 = vmul.f32 %v905, %v1289
    %v1418 = vmul.f32 %v906, %v1290
    %v1419 = vmul.f32 %v907, %v1291
    %v1420 = vmul.f32 %v908, %v1292
    %v1421 = vmul.f32 %v909, %v1293
    %v1422 = vmul.f32 %v910, %v1294
    %v1423 = vmul.f32 %v911, %v1295
    %v1424 = vmul.f32 %v912, %v1296
    %v1425 = vmul.f32 %v913, %v1297
    %v1426 = vmul.f32 %v914, %v1298
    %v1427 = vmul.f32 %v915, %v1299
    %v1428 = vmul.f32 %v916, %v1300
    %v1429 = vmul.f32 %v917, %v1301
    %v1430 = vmul.f32 %v918, %v1302
    %v1431 = vmul.f32 %v919, %v1303
    %v1432 = vmul.f32 %v920, %v1304
    %v1433 = vmul.f32 %v921, %v1305
    %v1434 = vmul.f32 %v922, %v1306
    %v1435 = vmul.f32 %v923, %v1307
    %v1436 = vmul.f32 %v924, %v1308
    %v1437 = vmul.f32 %v925, %v1309
    %v1438 = vmul.f32 %v926, %v1310
    %v1439 = vmul.f32 %v927, %v1311
    %v1440 = vmul.f32 %v928, %v1312
    %v1441 = vmul.f32 %v929, %v1313
    %v1442 = vmul.f32 %v930, %v1314
    %v1443 = vpack.c.bf16 %v1319, %v1315
    %v1444 = vpack.c.bf16 %v1320, %v1316
    %v1445 = vpack.c.bf16 %v1321, %v1317
    %v1446 = vpack.c.bf16 %v1322, %v1318
    %v1447 = vpack.c.bf16 %v1327, %v1323
    %v1448 = vpack.c.bf16 %v1328, %v1324
    %v1449 = vpack.c.bf16 %v1329, %v1325
    %v1450 = vpack.c.bf16 %v1330, %v1326
    %v1451 = vpack.c.bf16 %v1335, %v1331
    %v1452 = vpack.c.bf16 %v1336, %v1332
    %v1453 = vpack.c.bf16 %v1337, %v1333
    %v1454 = vpack.c.bf16 %v1338, %v1334
    %v1455 = vpack.c.bf16 %v1343, %v1339
    %v1456 = vpack.c.bf16 %v1344, %v1340
    %v1457 = vpack.c.bf16 %v1345, %v1341
    %v1458 = vpack.c.bf16 %v1346, %v1342
    %v1459 = vpack.c.bf16 %v1351, %v1347
    %v1460 = vpack.c.bf16 %v1352, %v1348
    %v1461 = vpack.c.bf16 %v1353, %v1349
    %v1462 = vpack.c.bf16 %v1354, %v1350
    %v1463 = vpack.c.bf16 %v1359, %v1355
    %v1464 = vpack.c.bf16 %v1360, %v1356
    %v1465 = vpack.c.bf16 %v1361, %v1357
    %v1466 = vpack.c.bf16 %v1362, %v1358
    %v1467 = vpack.c.bf16 %v1367, %v1363
    %v1468 = vpack.c.bf16 %v1368, %v1364
    %v1469 = vpack.c.bf16 %v1369, %v1365
    %v1470 = vpack.c.bf16 %v1370, %v1366
    %v1471 = vpack.c.bf16 %v1375, %v1371
    %v1472 = vpack.c.bf16 %v1376, %v1372
    %v1473 = vpack.c.bf16 %v1377, %v1373
    %v1474 = vpack.c.bf16 %v1378, %v1374
    %v1475 = vpack.c.bf16 %v1383, %v1379
    %v1476 = vpack.c.bf16 %v1384, %v1380
    %v1477 = vpack.c.bf16 %v1385, %v1381
    %v1478 = vpack.c.bf16 %v1386, %v1382
    %v1479 = vpack.c.bf16 %v1391, %v1387
    %v1480 = vpack.c.bf16 %v1392, %v1388
    %v1481 = vpack.c.bf16 %v1393, %v1389
    %v1482 = vpack.c.bf16 %v1394, %v1390
    %v1483 = vpack.c.bf16 %v1399, %v1395
    %v1484 = vpack.c.bf16 %v1400, %v1396
    %v1485 = vpack.c.bf16 %v1401, %v1397
    %v1486 = vpack.c.bf16 %v1402, %v1398
    %v1487 = vpack.c.bf16 %v1407, %v1403
    %v1488 = vpack.c.bf16 %v1408, %v1404
    %v1489 = vpack.c.bf16 %v1409, %v1405
    %v1490 = vpack.c.bf16 %v1410, %v1406
    %v1491 = vpack.c.bf16 %v1415, %v1411
    %v1492 = vpack.c.bf16 %v1416, %v1412
    %v1493 = vpack.c.bf16 %v1417, %v1413
    %v1494 = vpack.c.bf16 %v1418, %v1414
    %v1495 = vpack.c.bf16 %v1423, %v1419
    %v1496 = vpack.c.bf16 %v1424, %v1420
    %v1497 = vpack.c.bf16 %v1425, %v1421
    %v1498 = vpack.c.bf16 %v1426, %v1422
    %v1499 = vpack.c.bf16 %v1431, %v1427
    %v1500 = vpack.c.bf16 %v1432, %v1428
    %v1501 = vpack.c.bf16 %v1433, %v1429
    %v1502 = vpack.c.bf16 %v1434, %v1430
    %v1503 = vpack.c.bf16 %v1439, %v1435
    %v1504 = vpack.c.bf16 %v1440, %v1436
    %v1505 = vpack.c.bf16 %v1441, %v1437
    %v1506 = vpack.c.bf16 %v1442, %v1438
    %v1507 = vld [vmem:[#allocation8] sm:$0xf]
    %v1508 = vld [vmem:[#allocation8 + $0x4] sm:$0xf]
    %v1509 = vld [vmem:[#allocation8 + $0x8] sm:$0xf]
    %v1510 = vld [vmem:[#allocation8 + $0xc] sm:$0xf]
    %v1511 = vld [vmem:[#allocation8 + $0x10] sm:$0xf]
    %v1512 = vld [vmem:[#allocation8 + $0x14] sm:$0xf]
    %v1513 = vld [vmem:[#allocation8 + $0x18] sm:$0xf]
    %v1514 = vld [vmem:[#allocation8 + $0x1c] sm:$0xf]
    %v1515 = vld [vmem:[#allocation8 + $0x20] sm:$0xf]
    %v1516 = vld [vmem:[#allocation8 + $0x24] sm:$0xf]
    %v1517 = vld [vmem:[#allocation8 + $0x28] sm:$0xf]
    %v1518 = vld [vmem:[#allocation8 + $0x2c] sm:$0xf]
    %v1519 = vld [vmem:[#allocation8 + $0x30] sm:$0xf]
    %v1520 = vld [vmem:[#allocation8 + $0x34] sm:$0xf]
    %v1521 = vld [vmem:[#allocation8 + $0x38] sm:$0xf]
    %v1522 = vld [vmem:[#allocation8 + $0x3c] sm:$0xf]
    %v1523 = vld [vmem:[#allocation8 + $0x40] sm:$0xf]
    %v1524 = vld [vmem:[#allocation8 + $0x44] sm:$0xf]
    %v1525 = vld [vmem:[#allocation8 + $0x48] sm:$0xf]
    %v1526 = vld [vmem:[#allocation8 + $0x4c] sm:$0xf]
    %v1527 = vld [vmem:[#allocation8 + $0x50] sm:$0xf]
    %v1528 = vld [vmem:[#allocation8 + $0x54] sm:$0xf]
    %v1529 = vld [vmem:[#allocation8 + $0x58] sm:$0xf]
    %v1530 = vld [vmem:[#allocation8 + $0x5c] sm:$0xf]
    %v1531 = vld [vmem:[#allocation8 + $0x60] sm:$0xf]
    %v1532 = vld [vmem:[#allocation8 + $0x64] sm:$0xf]
    %v1533 = vld [vmem:[#allocation8 + $0x68] sm:$0xf]
    %v1534 = vld [vmem:[#allocation8 + $0x6c] sm:$0xf]
    %v1535 = vld [vmem:[#allocation8 + $0x70] sm:$0xf]
    %v1536 = vld [vmem:[#allocation8 + $0x74] sm:$0xf]
    %v1537 = vld [vmem:[#allocation8 + $0x78] sm:$0xf]
    %v1538 = vld [vmem:[#allocation8 + $0x7c] sm:$0xf]
    %v1539 = vld [vmem:[#allocation8 + $0x80] sm:$0xf]
    %v1540 = vld [vmem:[#allocation8 + $0x84] sm:$0xf]
    %v1541 = vld [vmem:[#allocation8 + $0x88] sm:$0xf]
    %v1542 = vld [vmem:[#allocation8 + $0x8c] sm:$0xf]
    %v1543 = vld [vmem:[#allocation8 + $0x90] sm:$0xf]
    %v1544 = vld [vmem:[#allocation8 + $0x94] sm:$0xf]
    %v1545 = vld [vmem:[#allocation8 + $0x98] sm:$0xf]
    %v1546 = vld [vmem:[#allocation8 + $0x9c] sm:$0xf]
    %v1547 = vld [vmem:[#allocation8 + $0xa0] sm:$0xf]
    %v1548 = vld [vmem:[#allocation8 + $0xa4] sm:$0xf]
    %v1549 = vld [vmem:[#allocation8 + $0xa8] sm:$0xf]
    %v1550 = vld [vmem:[#allocation8 + $0xac] sm:$0xf]
    %v1551 = vld [vmem:[#allocation8 + $0xb0] sm:$0xf]
    %v1552 = vld [vmem:[#allocation8 + $0xb4] sm:$0xf]
    %v1553 = vld [vmem:[#allocation8 + $0xb8] sm:$0xf]
    %v1554 = vld [vmem:[#allocation8 + $0xbc] sm:$0xf]
    %v1555 = vld [vmem:[#allocation8 + $0xc0] sm:$0xf]
    %v1556 = vld [vmem:[#allocation8 + $0xc4] sm:$0xf]
    %v1557 = vld [vmem:[#allocation8 + $0xc8] sm:$0xf]
    %v1558 = vld [vmem:[#allocation8 + $0xcc] sm:$0xf]
    %v1559 = vld [vmem:[#allocation8 + $0xd0] sm:$0xf]
    %v1560 = vld [vmem:[#allocation8 + $0xd4] sm:$0xf]
    %v1561 = vld [vmem:[#allocation8 + $0xd8] sm:$0xf]
    %v1562 = vld [vmem:[#allocation8 + $0xdc] sm:$0xf]
    %v1563 = vld [vmem:[#allocation8 + $0xe0] sm:$0xf]
    %v1564 = vld [vmem:[#allocation8 + $0xe4] sm:$0xf]
    %v1565 = vld [vmem:[#allocation8 + $0xe8] sm:$0xf]
    %v1566 = vld [vmem:[#allocation8 + $0xec] sm:$0xf]
    %v1567 = vld [vmem:[#allocation8 + $0xf0] sm:$0xf]
    %v1568 = vld [vmem:[#allocation8 + $0xf4] sm:$0xf]
    %v1569 = vld [vmem:[#allocation8 + $0xf8] sm:$0xf]
    %v1570 = vld [vmem:[#allocation8 + $0xfc] sm:$0xf]
    %v1571 = vld [vmem:[%s4] sm:$0x1]
    %v1573 = vlaneseq
    %v1574 = vshrl.u32 %v1573, 7
    %v1575 = vsub.s32 0, %v1574
    %v1576 = vrot.slane %v1571, %v1575
    %v1642 = vunpack.c.l.b16 %v1507
    %v1643 = vunpack.c.l.b16 %v1508
    %v1644 = vunpack.c.l.b16 %v1509
    %v1645 = vunpack.c.l.b16 %v1510
    %v1646 = vunpack.c.l.b16 %v1511
    %v1647 = vunpack.c.l.b16 %v1512
    %v1648 = vunpack.c.l.b16 %v1513
    %v1649 = vunpack.c.l.b16 %v1514
    %v1650 = vunpack.c.l.b16 %v1515
    %v1651 = vunpack.c.l.b16 %v1516
    %v1652 = vunpack.c.l.b16 %v1517
    %v1653 = vunpack.c.l.b16 %v1518
    %v1654 = vunpack.c.l.b16 %v1519
    %v1655 = vunpack.c.l.b16 %v1520
    %v1656 = vunpack.c.l.b16 %v1521
    %v1657 = vunpack.c.l.b16 %v1522
    %v1658 = vunpack.c.l.b16 %v1523
    %v1659 = vunpack.c.l.b16 %v1524
    %v1660 = vunpack.c.l.b16 %v1525
    %v1661 = vunpack.c.l.b16 %v1526
    %v1662 = vunpack.c.l.b16 %v1527
    %v1663 = vunpack.c.l.b16 %v1528
    %v1664 = vunpack.c.l.b16 %v1529
    %v1665 = vunpack.c.l.b16 %v1530
    %v1666 = vunpack.c.l.b16 %v1531
    %v1667 = vunpack.c.l.b16 %v1532
    %v1668 = vunpack.c.l.b16 %v1533
    %v1669 = vunpack.c.l.b16 %v1534
    %v1670 = vunpack.c.l.b16 %v1535
    %v1671 = vunpack.c.l.b16 %v1536
    %v1672 = vunpack.c.l.b16 %v1537
    %v1673 = vunpack.c.l.b16 %v1538
    %v1674 = vunpack.c.l.b16 %v1539
    %v1675 = vunpack.c.l.b16 %v1540
    %v1676 = vunpack.c.l.b16 %v1541
    %v1677 = vunpack.c.l.b16 %v1542
    %v1678 = vunpack.c.l.b16 %v1543
    %v1679 = vunpack.c.l.b16 %v1544
    %v1680 = vunpack.c.l.b16 %v1545
    %v1681 = vunpack.c.l.b16 %v1546
    %v1682 = vunpack.c.l.b16 %v1547
    %v1683 = vunpack.c.l.b16 %v1548
    %v1684 = vunpack.c.l.b16 %v1549
    %v1685 = vunpack.c.l.b16 %v1550
    %v1686 = vunpack.c.l.b16 %v1551
    %v1687 = vunpack.c.l.b16 %v1552
    %v1688 = vunpack.c.l.b16 %v1553
    %v1689 = vunpack.c.l.b16 %v1554
    %v1690 = vunpack.c.l.b16 %v1555
    %v1691 = vunpack.c.l.b16 %v1556
    %v1692 = vunpack.c.l.b16 %v1557
    %v1693 = vunpack.c.l.b16 %v1558
    %v1694 = vunpack.c.l.b16 %v1559
    %v1695 = vunpack.c.l.b16 %v1560
    %v1696 = vunpack.c.l.b16 %v1561
    %v1697 = vunpack.c.l.b16 %v1562
    %v1698 = vunpack.c.l.b16 %v1563
    %v1699 = vunpack.c.l.b16 %v1564
    %v1700 = vunpack.c.l.b16 %v1565
    %v1701 = vunpack.c.l.b16 %v1566
    %v1702 = vunpack.c.l.b16 %v1567
    %v1703 = vunpack.c.l.b16 %v1568
    %v1704 = vunpack.c.l.b16 %v1569
    %v1705 = vunpack.c.l.b16 %v1570
    %v1706 = vpack.c.b16 %v1643, %v1642
    %v1707 = vpack.c.b16 %v1645, %v1644
    %v1708 = vpack.c.b16 %v1647, %v1646
    %v1709 = vpack.c.b16 %v1649, %v1648
    %v1710 = vpack.c.b16 %v1651, %v1650
    %v1711 = vpack.c.b16 %v1653, %v1652
    %v1712 = vpack.c.b16 %v1655, %v1654
    %v1713 = vpack.c.b16 %v1657, %v1656
    %v1714 = vpack.c.b16 %v1659, %v1658
    %v1715 = vpack.c.b16 %v1661, %v1660
    %v1716 = vpack.c.b16 %v1663, %v1662
    %v1717 = vpack.c.b16 %v1665, %v1664
    %v1718 = vpack.c.b16 %v1667, %v1666
    %v1719 = vpack.c.b16 %v1669, %v1668
    %v1720 = vpack.c.b16 %v1671, %v1670
    %v1721 = vpack.c.b16 %v1673, %v1672
    %v1722 = vpack.c.b16 %v1675, %v1674
    %v1723 = vpack.c.b16 %v1677, %v1676
    %v1724 = vpack.c.b16 %v1679, %v1678
    %v1725 = vpack.c.b16 %v1681, %v1680
    %v1726 = vpack.c.b16 %v1683, %v1682
    %v1727 = vpack.c.b16 %v1685, %v1684
    %v1728 = vpack.c.b16 %v1687, %v1686
    %v1729 = vpack.c.b16 %v1689, %v1688
    %v1730 = vpack.c.b16 %v1691, %v1690
    %v1731 = vpack.c.b16 %v1693, %v1692
    %v1732 = vpack.c.b16 %v1695, %v1694
    %v1733 = vpack.c.b16 %v1697, %v1696
    %v1734 = vpack.c.b16 %v1699, %v1698
    %v1735 = vpack.c.b16 %v1701, %v1700
    %v1736 = vpack.c.b16 %v1703, %v1702
    %v1737 = vpack.c.b16 %v1705, %v1704
    %1770 = vmatprep.subr.bf16.mxu0 0
    %1771 = vmatpush1.bf16.msra.mxu0 %v1713
    %1772 = vmatprep.subr.bf16.mxu0 0
    %1773 = vmatpush1.bf16.msra.mxu0 %v1712
    %1774 = vmatprep.subr.bf16.mxu0 0
    %1775 = vmatpush1.bf16.msra.mxu0 %v1711
    %1776 = vmatprep.subr.bf16.mxu0 0
    %1777 = vmatpush1.bf16.msra.mxu0 %v1710
    %1778 = vmatprep.subr.bf16.mxu0 0
    %1779 = vmatpush1.bf16.msra.mxu0 %v1709
    %1780 = vmatprep.subr.bf16.mxu0 0
    %1781 = vmatpush1.bf16.msra.mxu0 %v1708
    %1782 = vmatprep.subr.bf16.mxu0 0
    %1783 = vmatpush1.bf16.msra.mxu0 %v1707
    %1784 = vmatprep.subr.bf16.mxu0 0
    %1785 = vmatpush1.bf16.msra.mxu0 %v1706
    %1786 = vmatprep.subr.bf16.mxu0 0
    %1787 = vmatpush2.bf16.msra.mxu0 %v1721
    %1788 = vmatprep.subr.bf16.mxu0 0
    %1789 = vmatpush2.bf16.msra.mxu0 %v1720
    %1790 = vmatprep.subr.bf16.mxu0 0
    %1791 = vmatpush2.bf16.msra.mxu0 %v1719
    %1792 = vmatprep.subr.bf16.mxu0 0
    %1793 = vmatpush2.bf16.msra.mxu0 %v1718
    %1794 = vmatprep.subr.bf16.mxu0 0
    %1795 = vmatpush2.bf16.msra.mxu0 %v1717
    %1796 = vmatprep.subr.bf16.mxu0 0
    %1797 = vmatpush2.bf16.msra.mxu0 %v1716
    %1798 = vmatprep.subr.bf16.mxu0 0
    %1799 = vmatpush2.bf16.msra.mxu0 %v1715
    %1800 = vmatprep.subr.bf16.mxu0 0
    %1801 = vmatpush2.bf16.msra.mxu0 %v1714
    %1802 = vmatprep.mubr.bf16.mxu0 %v1444
    %1803 = vmatmul.mubr.bf16.gmra.mxu0 %v1443
    %v1804 = vpop.f32.mrf.mxu0
    %v1805 = vadd.f32 %v1576, %v1804
    %v1806 = vpop.f32.mrf.mxu0
    %v1807 = vpop.f32.mrf.mxu0
    %v1808 = vadd.f32 %v1576, %v1807
    %v1809 = vpop.f32.mrf.mxu0
    %1810 = vmatprep.mubr.bf16.mxu0 %v1448
    %1811 = vmatmul.mubr.bf16.gmra.mxu0 %v1447
    %v1812 = vpop.f32.mrf.mxu0
    %v1813 = vadd.f32 %v1576, %v1812
    %v1814 = vpop.f32.mrf.mxu0
    %v1815 = vpop.f32.mrf.mxu0
    %v1816 = vadd.f32 %v1576, %v1815
    %v1817 = vpop.f32.mrf.mxu0
    %1818 = vmatprep.mubr.bf16.mxu0 %v1452
    %1819 = vmatmul.mubr.bf16.gmra.mxu0 %v1451
    %v1820 = vpop.f32.mrf.mxu0
    %v1821 = vadd.f32 %v1576, %v1820
    %v1822 = vpop.f32.mrf.mxu0
    %v1823 = vpop.f32.mrf.mxu0
    %v1824 = vadd.f32 %v1576, %v1823
    %v1825 = vpop.f32.mrf.mxu0
    %1826 = vmatprep.mubr.bf16.mxu0 %v1456
    %1827 = vmatmul.mubr.bf16.gmra.mxu0 %v1455
    %v1828 = vpop.f32.mrf.mxu0
    %v1829 = vadd.f32 %v1576, %v1828
    %v1830 = vpop.f32.mrf.mxu0
    %v1831 = vpop.f32.mrf.mxu0
    %v1832 = vadd.f32 %v1576, %v1831
    %v1833 = vpop.f32.mrf.mxu0
    %1834 = vmatprep.mubr.bf16.mxu0 %v1460
    %1835 = vmatmul.mubr.bf16.gmra.mxu0 %v1459
    %v1836 = vpop.f32.mrf.mxu0
    %v1837 = vadd.f32 %v1576, %v1836
    %v1838 = vpop.f32.mrf.mxu0
    %v1839 = vpop.f32.mrf.mxu0
    %v1840 = vadd.f32 %v1576, %v1839
    %v1841 = vpop.f32.mrf.mxu0
    %1842 = vmatprep.mubr.bf16.mxu0 %v1464
    %1843 = vmatmul.mubr.bf16.gmra.mxu0 %v1463
    %v1844 = vpop.f32.mrf.mxu0
    %v1845 = vadd.f32 %v1576, %v1844
    %v1846 = vpop.f32.mrf.mxu0
    %v1847 = vpop.f32.mrf.mxu0
    %v1848 = vadd.f32 %v1576, %v1847
    %v1849 = vpop.f32.mrf.mxu0
    %1850 = vmatprep.mubr.bf16.mxu0 %v1468
    %1851 = vmatmul.mubr.bf16.gmra.mxu0 %v1467
    %v1852 = vpop.f32.mrf.mxu0
    %v1853 = vadd.f32 %v1576, %v1852
    %v1854 = vpop.f32.mrf.mxu0
    %v1855 = vpop.f32.mrf.mxu0
    %v1856 = vadd.f32 %v1576, %v1855
    %v1857 = vpop.f32.mrf.mxu0
    %1858 = vmatprep.mubr.bf16.mxu0 %v1472
    %1859 = vmatmul.mubr.bf16.gmra.mxu0 %v1471
    %v1860 = vpop.f32.mrf.mxu0
    %v1861 = vadd.f32 %v1576, %v1860
    %v1862 = vpop.f32.mrf.mxu0
    %v1863 = vpop.f32.mrf.mxu0
    %v1864 = vadd.f32 %v1576, %v1863
    %v1865 = vpop.f32.mrf.mxu0
    %1866 = vmatprep.mubr.bf16.mxu0 %v1476
    %1867 = vmatmul.mubr.bf16.gmra.mxu0 %v1475
    %v1868 = vpop.f32.mrf.mxu0
    %v1869 = vadd.f32 %v1576, %v1868
    %v1870 = vpop.f32.mrf.mxu0
    %v1871 = vpop.f32.mrf.mxu0
    %v1872 = vadd.f32 %v1576, %v1871
    %v1873 = vpop.f32.mrf.mxu0
    %1874 = vmatprep.mubr.bf16.mxu0 %v1480
    %1875 = vmatmul.mubr.bf16.gmra.mxu0 %v1479
    %v1876 = vpop.f32.mrf.mxu0
    %v1877 = vadd.f32 %v1576, %v1876
    %v1878 = vpop.f32.mrf.mxu0
    %v1879 = vpop.f32.mrf.mxu0
    %v1880 = vadd.f32 %v1576, %v1879
    %v1881 = vpop.f32.mrf.mxu0
    %1882 = vmatprep.mubr.bf16.mxu0 %v1484
    %1883 = vmatmul.mubr.bf16.gmra.mxu0 %v1483
    %v1884 = vpop.f32.mrf.mxu0
    %v1885 = vadd.f32 %v1576, %v1884
    %v1886 = vpop.f32.mrf.mxu0
    %v1887 = vpop.f32.mrf.mxu0
    %v1888 = vadd.f32 %v1576, %v1887
    %v1889 = vpop.f32.mrf.mxu0
    %1890 = vmatprep.mubr.bf16.mxu0 %v1488
    %1891 = vmatmul.mubr.bf16.gmra.mxu0 %v1487
    %v1892 = vpop.f32.mrf.mxu0
    %v1893 = vadd.f32 %v1576, %v1892
    %v1894 = vpop.f32.mrf.mxu0
    %v1895 = vpop.f32.mrf.mxu0
    %v1896 = vadd.f32 %v1576, %v1895
    %v1897 = vpop.f32.mrf.mxu0
    %1898 = vmatprep.mubr.bf16.mxu0 %v1492
    %1899 = vmatmul.mubr.bf16.gmra.mxu0 %v1491
    %v1900 = vpop.f32.mrf.mxu0
    %v1901 = vadd.f32 %v1576, %v1900
    %v1902 = vpop.f32.mrf.mxu0
    %v1903 = vpop.f32.mrf.mxu0
    %v1904 = vadd.f32 %v1576, %v1903
    %v1905 = vpop.f32.mrf.mxu0
    %1906 = vmatprep.mubr.bf16.mxu0 %v1496
    %1907 = vmatmul.mubr.bf16.gmra.mxu0 %v1495
    %v1908 = vpop.f32.mrf.mxu0
    %v1909 = vadd.f32 %v1576, %v1908
    %v1910 = vpop.f32.mrf.mxu0
    %v1911 = vpop.f32.mrf.mxu0
    %v1912 = vadd.f32 %v1576, %v1911
    %v1913 = vpop.f32.mrf.mxu0
    %1914 = vmatprep.mubr.bf16.mxu0 %v1500
    %1915 = vmatmul.mubr.bf16.gmra.mxu0 %v1499
    %v1916 = vpop.f32.mrf.mxu0
    %v1917 = vadd.f32 %v1576, %v1916
    %v1918 = vpop.f32.mrf.mxu0
    %v1919 = vpop.f32.mrf.mxu0
    %v1920 = vadd.f32 %v1576, %v1919
    %v1921 = vpop.f32.mrf.mxu0
    %1922 = vmatprep.mubr.bf16.mxu0 %v1504
    %1923 = vmatmul.mubr.bf16.gmra.mxu0 %v1503
    %v1924 = vpop.f32.mrf.mxu0
    %v1925 = vadd.f32 %v1576, %v1924
    %v1926 = vpop.f32.mrf.mxu0
    %v1927 = vpop.f32.mrf.mxu0
    %v1928 = vadd.f32 %v1576, %v1927
    %v1929 = vpop.f32.mrf.mxu0
    %1930 = vdwg.mxu0
    %1931 = vmatprep.subr.bf16.mxu0 0
    %1932 = vmatpush1.bf16.msra.mxu0 %v1729
    %1933 = vmatprep.subr.bf16.mxu0 0
    %1934 = vmatpush1.bf16.msra.mxu0 %v1728
    %1935 = vmatprep.subr.bf16.mxu0 0
    %1936 = vmatpush1.bf16.msra.mxu0 %v1727
    %1937 = vmatprep.subr.bf16.mxu0 0
    %1938 = vmatpush1.bf16.msra.mxu0 %v1726
    %1939 = vmatprep.subr.bf16.mxu0 0
    %1940 = vmatpush1.bf16.msra.mxu0 %v1725
    %1941 = vmatprep.subr.bf16.mxu0 0
    %1942 = vmatpush1.bf16.msra.mxu0 %v1724
    %1943 = vmatprep.subr.bf16.mxu0 0
    %1944 = vmatpush1.bf16.msra.mxu0 %v1723
    %1945 = vmatprep.subr.bf16.mxu0 0
    %1946 = vmatpush1.bf16.msra.mxu0 %v1722
    %1947 = vmatprep.subr.bf16.mxu0 0
    %1948 = vmatpush2.bf16.msra.mxu0 %v1737
    %1949 = vmatprep.subr.bf16.mxu0 0
    %1950 = vmatpush2.bf16.msra.mxu0 %v1736
    %1951 = vmatprep.subr.bf16.mxu0 0
    %1952 = vmatpush2.bf16.msra.mxu0 %v1735
    %1953 = vmatprep.subr.bf16.mxu0 0
    %1954 = vmatpush2.bf16.msra.mxu0 %v1734
    %1955 = vmatprep.subr.bf16.mxu0 0
    %1956 = vmatpush2.bf16.msra.mxu0 %v1733
    %1957 = vmatprep.subr.bf16.mxu0 0
    %1958 = vmatpush2.bf16.msra.mxu0 %v1732
    %1959 = vmatprep.subr.bf16.mxu0 0
    %1960 = vmatpush2.bf16.msra.mxu0 %v1731
    %1961 = vmatprep.subr.bf16.mxu0 0
    %1962 = vmatpush2.bf16.msra.mxu0 %v1730
    %1963 = vmatprep.mubr.bf16.mxu0 %v1446
    %1964 = vmatmul.mubr.bf16.gmra.mxu0 %v1445
    %v1965 = vpop.f32.mrf.mxu0
    %v1966 = vadd.f32 %v1805, %v1965
    %v1967 = vpop.f32.mrf.mxu0
    %v1968 = vpop.f32.mrf.mxu0
    %v1969 = vadd.f32 %v1808, %v1968
    %v1970 = vpop.f32.mrf.mxu0
    %1971 = vmatprep.mubr.bf16.mxu0 %v1450
    %1972 = vmatmul.mubr.bf16.gmra.mxu0 %v1449
    %v1973 = vpop.f32.mrf.mxu0
    %v1974 = vadd.f32 %v1813, %v1973
    %v1975 = vpop.f32.mrf.mxu0
    %v1976 = vpop.f32.mrf.mxu0
    %v1977 = vadd.f32 %v1816, %v1976
    %v1978 = vpop.f32.mrf.mxu0
    %1979 = vmatprep.mubr.bf16.mxu0 %v1454
    %1980 = vmatmul.mubr.bf16.gmra.mxu0 %v1453
    %v1981 = vpop.f32.mrf.mxu0
    %v1982 = vadd.f32 %v1821, %v1981
    %v1983 = vpop.f32.mrf.mxu0
    %v1984 = vpop.f32.mrf.mxu0
    %v1985 = vadd.f32 %v1824, %v1984
    %v1986 = vpop.f32.mrf.mxu0
    %1987 = vmatprep.mubr.bf16.mxu0 %v1458
    %1988 = vmatmul.mubr.bf16.gmra.mxu0 %v1457
    %v1989 = vpop.f32.mrf.mxu0
    %v1990 = vadd.f32 %v1829, %v1989
    %v1991 = vpop.f32.mrf.mxu0
    %v1992 = vpop.f32.mrf.mxu0
    %v1993 = vadd.f32 %v1832, %v1992
    %v1994 = vpop.f32.mrf.mxu0
    %1995 = vmatprep.mubr.bf16.mxu0 %v1462
    %1996 = vmatmul.mubr.bf16.gmra.mxu0 %v1461
    %v1997 = vpop.f32.mrf.mxu0
    %v1998 = vadd.f32 %v1837, %v1997
    %v1999 = vpop.f32.mrf.mxu0
    %v2000 = vpop.f32.mrf.mxu0
    %v2001 = vadd.f32 %v1840, %v2000
    %v2002 = vpop.f32.mrf.mxu0
    %2003 = vmatprep.mubr.bf16.mxu0 %v1466
    %2004 = vmatmul.mubr.bf16.gmra.mxu0 %v1465
    %v2005 = vpop.f32.mrf.mxu0
    %v2006 = vadd.f32 %v1845, %v2005
    %v2007 = vpop.f32.mrf.mxu0
    %v2008 = vpop.f32.mrf.mxu0
    %v2009 = vadd.f32 %v1848, %v2008
    %v2010 = vpop.f32.mrf.mxu0
    %2011 = vmatprep.mubr.bf16.mxu0 %v1470
    %2012 = vmatmul.mubr.bf16.gmra.mxu0 %v1469
    %v2013 = vpop.f32.mrf.mxu0
    %v2014 = vadd.f32 %v1853, %v2013
    %v2015 = vpop.f32.mrf.mxu0
    %v2016 = vpop.f32.mrf.mxu0
    %v2017 = vadd.f32 %v1856, %v2016
    %v2018 = vpop.f32.mrf.mxu0
    %2019 = vmatprep.mubr.bf16.mxu0 %v1474
    %2020 = vmatmul.mubr.bf16.gmra.mxu0 %v1473
    %v2021 = vpop.f32.mrf.mxu0
    %v2022 = vadd.f32 %v1861, %v2021
    %v2023 = vpop.f32.mrf.mxu0
    %v2024 = vpop.f32.mrf.mxu0
    %v2025 = vadd.f32 %v1864, %v2024
    %v2026 = vpop.f32.mrf.mxu0
    %2027 = vmatprep.mubr.bf16.mxu0 %v1478
    %2028 = vmatmul.mubr.bf16.gmra.mxu0 %v1477
    %v2029 = vpop.f32.mrf.mxu0
    %v2030 = vadd.f32 %v1869, %v2029
    %v2031 = vpop.f32.mrf.mxu0
    %v2032 = vpop.f32.mrf.mxu0
    %v2033 = vadd.f32 %v1872, %v2032
    %v2034 = vpop.f32.mrf.mxu0
    %2035 = vmatprep.mubr.bf16.mxu0 %v1482
    %2036 = vmatmul.mubr.bf16.gmra.mxu0 %v1481
    %v2037 = vpop.f32.mrf.mxu0
    %v2038 = vadd.f32 %v1877, %v2037
    %v2039 = vpop.f32.mrf.mxu0
    %v2040 = vpop.f32.mrf.mxu0
    %v2041 = vadd.f32 %v1880, %v2040
    %v2042 = vpop.f32.mrf.mxu0
    %2043 = vmatprep.mubr.bf16.mxu0 %v1486
    %2044 = vmatmul.mubr.bf16.gmra.mxu0 %v1485
    %v2045 = vpop.f32.mrf.mxu0
    %v2046 = vadd.f32 %v1885, %v2045
    %v2047 = vpop.f32.mrf.mxu0
    %v2048 = vpop.f32.mrf.mxu0
    %v2049 = vadd.f32 %v1888, %v2048
    %v2050 = vpop.f32.mrf.mxu0
    %2051 = vmatprep.mubr.bf16.mxu0 %v1490
    %2052 = vmatmul.mubr.bf16.gmra.mxu0 %v1489
    %v2053 = vpop.f32.mrf.mxu0
    %v2054 = vadd.f32 %v1893, %v2053
    %v2055 = vpop.f32.mrf.mxu0
    %v2056 = vpop.f32.mrf.mxu0
    %v2057 = vadd.f32 %v1896, %v2056
    %v2058 = vpop.f32.mrf.mxu0
    %2059 = vmatprep.mubr.bf16.mxu0 %v1494
    %2060 = vmatmul.mubr.bf16.gmra.mxu0 %v1493
    %v2061 = vpop.f32.mrf.mxu0
    %v2062 = vadd.f32 %v1901, %v2061
    %v2063 = vpop.f32.mrf.mxu0
    %v2064 = vpop.f32.mrf.mxu0
    %v2065 = vadd.f32 %v1904, %v2064
    %v2066 = vpop.f32.mrf.mxu0
    %2067 = vmatprep.mubr.bf16.mxu0 %v1498
    %2068 = vmatmul.mubr.bf16.gmra.mxu0 %v1497
    %v2069 = vpop.f32.mrf.mxu0
    %v2070 = vadd.f32 %v1909, %v2069
    %v2071 = vpop.f32.mrf.mxu0
    %v2072 = vpop.f32.mrf.mxu0
    %v2073 = vadd.f32 %v1912, %v2072
    %v2074 = vpop.f32.mrf.mxu0
    %2075 = vmatprep.mubr.bf16.mxu0 %v1502
    %2076 = vmatmul.mubr.bf16.gmra.mxu0 %v1501
    %v2077 = vpop.f32.mrf.mxu0
    %v2078 = vadd.f32 %v1917, %v2077
    %v2079 = vpop.f32.mrf.mxu0
    %v2080 = vpop.f32.mrf.mxu0
    %v2081 = vadd.f32 %v1920, %v2080
    %v2082 = vpop.f32.mrf.mxu0
    %2083 = vmatprep.mubr.bf16.mxu0 %v1506
    %2084 = vmatmul.mubr.bf16.gmra.mxu0 %v1505
    %v2085 = vpop.f32.mrf.mxu0
    %v2086 = vadd.f32 %v1925, %v2085
    %v2087 = vpop.f32.mrf.mxu0
    %v2088 = vpop.f32.mrf.mxu0
    %v2089 = vadd.f32 %v1928, %v2088
    %v2090 = vpop.f32.mrf.mxu0
    %2091 = vdwg.mxu0
    %2092 = vst [vmem:[#allocation10] sm:$0xff] %v1966
    %2093 = vst [vmem:[#allocation10 + $0x8] sm:$0xff] %v1969
    %2094 = vst [vmem:[#allocation10 + $0x10] sm:$0xff] %v1974
    %2095 = vst [vmem:[#allocation10 + $0x18] sm:$0xff] %v1977
    %2096 = vst [vmem:[#allocation10 + $0x20] sm:$0xff] %v1982
    %2097 = vst [vmem:[#allocation10 + $0x28] sm:$0xff] %v1985
    %2098 = vst [vmem:[#allocation10 + $0x30] sm:$0xff] %v1990
    %2099 = vst [vmem:[#allocation10 + $0x38] sm:$0xff] %v1993
    %2100 = vst [vmem:[#allocation10 + $0x40] sm:$0xff] %v1998
    %2101 = vst [vmem:[#allocation10 + $0x48] sm:$0xff] %v2001
    %2102 = vst [vmem:[#allocation10 + $0x50] sm:$0xff] %v2006
    %2103 = vst [vmem:[#allocation10 + $0x58] sm:$0xff] %v2009
    %2104 = vst [vmem:[#allocation10 + $0x60] sm:$0xff] %v2014
    %2105 = vst [vmem:[#allocation10 + $0x68] sm:$0xff] %v2017
    %2106 = vst [vmem:[#allocation10 + $0x70] sm:$0xff] %v2022
    %2107 = vst [vmem:[#allocation10 + $0x78] sm:$0xff] %v2025
    %2108 = vst [vmem:[#allocation10 + $0x80] sm:$0xff] %v2030
    %2109 = vst [vmem:[#allocation10 + $0x88] sm:$0xff] %v2033
    %2110 = vst [vmem:[#allocation10 + $0x90] sm:$0xff] %v2038
    %2111 = vst [vmem:[#allocation10 + $0x98] sm:$0xff] %v2041
    %2112 = vst [vmem:[#allocation10 + $0xa0] sm:$0xff] %v2046
    %2113 = vst [vmem:[#allocation10 + $0xa8] sm:$0xff] %v2049
    %2114 = vst [vmem:[#allocation10 + $0xb0] sm:$0xff] %v2054
    %2115 = vst [vmem:[#allocation10 + $0xb8] sm:$0xff] %v2057
    %2116 = vst [vmem:[#allocation10 + $0xc0] sm:$0xff] %v2062
    %2117 = vst [vmem:[#allocation10 + $0xc8] sm:$0xff] %v2065
    %2118 = vst [vmem:[#allocation10 + $0xd0] sm:$0xff] %v2070
    %2119 = vst [vmem:[#allocation10 + $0xd8] sm:$0xff] %v2073
    %2120 = vst [vmem:[#allocation10 + $0xe0] sm:$0xff] %v2078
    %2121 = vst [vmem:[#allocation10 + $0xe8] sm:$0xff] %v2081
    %2122 = vst [vmem:[#allocation10 + $0xf0] sm:$0xff] %v2086
    %2123 = vst [vmem:[#allocation10 + $0xf8] sm:$0xff] %v2089
    // Predicated region
    $region38: #{tpu_custom_call.1} parent=1 // pred_check
      _
    $region39: #{tpu_custom_call.1} parent=1 // pred_check_branch
      %2125 = sbr.rel (0) target = $region41
    $region40: #{tpu_custom_call.1} parent=1 // pred_region
      %s2127 = ssub.s32 4096, 4096
      %2128 = vsyncadd [#allocation4], %s2127
      %s2129 = sshll.u32 [#allocation10], 4
      %s2130 = int_to_ptr.vmem [resolvable:$true] %s2129
      %2135 = dma.vmem_to_hbm [thread:$0]  %s2130, 4096, %s5, [#allocation4], 128, 128, 8
    $region41: #{tpu_custom_call.1} parent=1 // pred_fallthru
      _
    // Predicated region
    $region42: #{tpu_custom_call.1} parent=1 // pred_check
      _
    $region43: #{tpu_custom_call.1} parent=1 // pred_check_branch
      %2137 = sbr.rel (0) target = $region45
    $region44: #{tpu_custom_call.1} parent=1 // pred_region
      %2138 = dma.done [#allocation4], 4096
    $region45: #{tpu_custom_call.1} parent=1 // pred_fallthru
      _
    %2139 = vsyncpa [#allocation3], 1
    %2140 = vsyncpa [#allocation6], 1
    %2141 = vsyncpa [#allocation9], 1
    %2142 = vsyncpa [#allocation4], 1

</llo_original>
